<compile_context>
chip_gen: v7x
topology: tpu7x:2x2x1
jax: 0.10.0
libtpu: 0.0.40
codegen_flags: <defaults>
</compile_context>

<pallas_src>
import numpy as np
import jax
import jax.numpy as jnp
from jax.experimental import pallas as pl
from jax.experimental.pallas import tpu as pltpu

LANE = 128                      # per-sample time-axis padding / lane width
_INV_SQRT2 = 0.7071067811865476


def _round_up(n, m):
    return ((n + m - 1) // m) * m


# ----------------------------- in-kernel math ------------------------------

def _erf_f32(z):
    # Abramowitz & Stegun 7.1.26 (|err| < 1.5e-7).
    a1, a2, a3, a4, a5 = 0.254829592, -0.284496736, 1.421413741, -1.453152027, 1.061405429
    p = 0.3275911
    za = jnp.abs(z)
    d = 1.0 + p * za
    # EUP-seeded reciprocal + one Newton step: keeps f32 accuracy without the
    # exact-divide (VPU) lowering.
    t0 = pl.reciprocal(d, approx=True)
    t = t0 * (2.0 - d * t0)
    poly = ((((a5 * t + a4) * t + a3) * t + a2) * t + a1) * t
    y = 1.0 - poly * jnp.exp(-za * za)
    return jnp.where(z >= 0.0, y, -y)


def _gelu_exact(x):
    # torch.nn.GELU() default ('none'): 0.5 * x * (1 + erf(x / sqrt(2)))
    return 0.5 * x * (1.0 + _erf_f32(x * _INV_SQRT2))


# -------------------------- one-time parameter prep --------------------------

def prepare_params(params, conv_kernel_size, seq_len):
    """Pack all parameters into two lane-aligned buffers (called once)."""
    K = conv_kernel_size
    conv = params["conv"]
    (w1, b1), (w2, b2) = params["mlp"]
    n_conv = len(conv)
    L_last = seq_len - n_conv * (K - 1)
    C_last = int(conv[-1][0].shape[0])
    H1 = int(w1.shape[0])
    F = int(w1.shape[1])
    n_out = int(w2.shape[0])
    assert F == C_last * L_last, "mlp_dims[0] must equal C_last * L_last"
    assert H1 <= LANE and n_out <= LANE

    # ---- small packed buffer: (rows, 128), every block starts on a row
    #      multiple of 8 and column 0 (sublane/lane aligned sub-views).
    layout = {}
    entries = []
    row = 0

    def add(name, arr2d):
        nonlocal row
        arr2d = np.asarray(arr2d, np.float32)
        r, c = arr2d.shape
        layout[name] = (row, r, c)
        entries.append((row, arr2d))
        row += _round_up(r, 8)

    for i, (w, b) in enumerate(conv):
        w = np.asarray(w, np.float32)
        b = np.asarray(b, np.float32)
        Cout, Cin, Kw = w.shape
        assert Kw == K
        for k in range(K):
            add(f"conv{i}_w{k}", w[:, :, k])              # (Cout, Cin)
        add(f"conv{i}_b", b.reshape(Cout, 1))             # column vector

    add("b1", np.asarray(b1, np.float32).reshape(1, H1))

    w2t = np.zeros((H1, LANE), np.float32)                # W2^T, cols padded to 128
    w2t[:, :n_out] = np.asarray(w2, np.float32).T
    add("w2t", w2t)

    b2p = np.zeros((1, LANE), np.float32)
    b2p[:, :n_out] = np.asarray(b2, np.float32).reshape(1, -1)
    add("b2", b2p)

    R = _round_up(row, 8)
    pbuf = np.zeros((R, LANE), np.float32)
    for r0, arr in entries:
        pbuf[r0:r0 + arr.shape[0], :arr.shape[1]] = arr

    # ---- W1 with the PyTorch view(B,-1) flatten order folded in, per-channel
    #      time axis zero-padded to LANE:  w1buf[c*LANE + t, j] = W1[j, c*L_last + t]
    w1_cl = np.asarray(w1, np.float32).T.reshape(C_last, L_last, H1)
    w1_pad = np.zeros((C_last, LANE, H1), np.float32)
    w1_pad[:, :L_last, :] = w1_cl
    w1buf = w1_pad.reshape(C_last * LANE, H1)

    meta = dict(
        K=K, n_conv=n_conv, L=seq_len, L_last=L_last, C_last=C_last,
        H1=H1, n_out=n_out,
        conv_dims=[int(conv[0][0].shape[1])] + [int(w.shape[0]) for w, _ in conv],
        layout=layout,
    )
    return {"pbuf": jnp.asarray(pbuf), "w1buf": jnp.asarray(w1buf), "meta": meta}


# ------------------------------ fused kernel --------------------------------

def _make_fused_kernel(meta):
    K = meta["K"]
    n_conv = meta["n_conv"]
    cdims = meta["conv_dims"]
    layout = meta["layout"]
    C_last = meta["C_last"]

    def kernel(x_ref, p_ref, w1_ref, o_ref):
        a = x_ref[...]                               # (C0, B*LANE), lane-dense
        N = a.shape[1]
        B = N // LANE

        def pview(name):
            r0, r, c = layout[name]
            return p_ref[r0:r0 + r, 0:c]

        # ---- conv blocks: GELU(Conv1d(x)); one MXU matmul per tap, taps
        #      realised by XLU lane-rolls of the whole slab (no masked slices).
        for i in range(n_conv):
            acc = None
            for k in range(K):
                ak = a if k == 0 else pltpu.roll(a, shift=N - k, axis=1)
                term = jnp.dot(pview(f"conv{i}_w{k}"), ak,
                               preferred_element_type=jnp.float32)
                acc = term if acc is None else acc + term
            a = _gelu_exact(acc + pview(f"conv{i}_b"))   # (Cout_i, B*LANE)

        # ---- flatten: permutation is pre-folded into W1's layout, so only a
        #      128-aligned relayout (b: lanes -> sublanes) remains.
        a3 = a.reshape(C_last, B, LANE)
        a3 = pltpu.einshape("cbl->bcl", a3)              # (B, C_last, LANE)
        feat = a3.reshape(B, C_last * LANE)              # (B, C_last*LANE), lane-dense

        # ---- MLP head: GELU(feat @ W1 + b1) [Dropout = identity, eval] @ W2^T + b2
        h1 = jnp.dot(feat, w1_ref[...], preferred_element_type=jnp.float32) + pview("b1")
        h1 = _gelu_exact(h1)                             # (B, H1)
        out = jnp.dot(h1, pview("w2t"), preferred_element_type=jnp.float32) + pview("b2")
        o_ref[...] = out.astype(o_ref.dtype)             # (B, 128) unmasked store

    return kernel


# ------------------------------ forward (glue) -------------------------------

def eegsubnet_forward(x_ncl, prep):
    """Equivalent of eegsubnet.forward (max_pooling=False, eval mode)."""
    meta = prep["meta"]
    B, C0, L = x_ncl.shape
    assert L == meta["L"] and C0 == meta["conv_dims"][0]

    # Layout plumbing only (no compute): channels-first, per-sample time axis
    # zero-padded to 128 lanes, batch folded into lanes -> (C0, B*128).
    xt = jnp.transpose(x_ncl.astype(jnp.float32), (1, 0, 2))       # (C0, B, L)
    xt = jnp.pad(xt, ((0, 0), (0, 0), (0, LANE - L)))              # (C0, B, LANE)
    x2d = xt.reshape(C0, B * LANE)

    # advisory cost estimate
    N = B * LANE
    flops, trans = 0, 0
    for i in range(meta["n_conv"]):
        flops += 2 * meta["K"] * meta["conv_dims"][i + 1] * meta["conv_dims"][i] * N
        trans += meta["conv_dims"][i + 1] * N
    flops += 2 * B * (meta["C_last"] * LANE) * meta["H1"] + 2 * B * meta["H1"] * LANE
    trans += B * meta["H1"]
    bytes_accessed = (x2d.size + prep["pbuf"].size + prep["w1buf"].size + B * LANE) * 4

    out_pad = pl.pallas_call(
        _make_fused_kernel(meta),
        out_shape=jax.ShapeDtypeStruct((B, LANE), jnp.float32),
        cost_estimate=pl.CostEstimate(
            flops=int(flops),
            transcendentals=int(trans),
            bytes_accessed=int(bytes_accessed)),
    )(x2d, prep["pbuf"], prep["w1buf"])

    return out_pad[:, :meta["n_out"]]


# --------------------------- pure-JAX reference -----------------------------

def torch_like_reference(x_ncl, params):
    x = x_ncl
    for w, b in params["conv"]:
        Cout, Cin, K = w.shape
        Lout = x.shape[2] - K + 1
        cols = jnp.stack([x[:, :, k:k + Lout] for k in range(K)], axis=-1)   # (B,Cin,Lout,K)
        y = jnp.einsum("bclk,ock->bol", cols, w) + b[None, :, None]
        x = jax.nn.gelu(y, approximate=False)
    x = x.reshape(x.shape[0], -1)
    (w1, b1), (w2, b2) = params["mlp"]
    h = jax.nn.gelu(x @ w1.T + b1, approximate=False)
    return h @ w2.T + b2


# ------------------------------------ main -----------------------------------

if __name__ == "__main__":
    # Small config: conv_dims=[4, 8, 16], kernel_size=3, L=16, mlp_dims=[192, 32, 8]
    B = 2
    L = 16
    conv_dims = [4, 8, 16]
    conv_kernel_size = 3
    Lout = L
    for _ in range(len(conv_dims) - 1):
        Lout = Lout - conv_kernel_size + 1
    mlp_dims = [conv_dims[-1] * Lout, 32, 8]

    key = jax.random.PRNGKey(0)
    keys = jax.random.split(key, 2 * (len(conv_dims) - 1) + 2 * (len(mlp_dims) - 1) + 1)
    ki = 0
    params = {"conv": [], "mlp": []}
    for i in range(len(conv_dims) - 1):
        w = 0.1 * jax.random.normal(
            keys[ki], (conv_dims[i + 1], conv_dims[i], conv_kernel_size), jnp.float32); ki += 1
        b = 0.05 * jax.random.normal(keys[ki], (conv_dims[i + 1],), jnp.float32); ki += 1
        params["conv"].append((w, b))
    for i in range(len(mlp_dims) - 1):
        w = 0.1 * jax.random.normal(keys[ki], (mlp_dims[i + 1], mlp_dims[i]), jnp.float32); ki += 1
        b = 0.05 * jax.random.normal(keys[ki], (mlp_dims[i + 1],), jnp.float32); ki += 1
        params["mlp"].append((w, b))

    x = jax.random.normal(keys[ki], (B, conv_dims[0], L), jnp.float32)   # NCL, like PyTorch

    prep = prepare_params(params, conv_kernel_size, L)     # one-time packing / layout prep
    out = jax.block_until_ready(eegsubnet_forward(x, prep))
    ref = jax.block_until_ready(torch_like_reference(x, params))

    assert out.shape == (B, mlp_dims[-1])
    # small headroom for the EUP-seeded (Newton-refined) reciprocal in erf
    np.testing.assert_allclose(np.asarray(out), np.asarray(ref), rtol=2e-4, atol=2e-4)
    print("KERNEL_OK")
</pallas_src>

<mosaic_0001>
module attributes {stable_mosaic.version = 11 : i64} {
  func.func @kernel(%arg0: memref<4x256xf32, #tpu.memory_space<vmem>>, %arg1: memref<144x128xf32, #tpu.memory_space<vmem>>, %arg2: memref<2048x32xf32, #tpu.memory_space<vmem>>, %arg3: memref<2x128xf32, #tpu.memory_space<vmem>>) attributes {dimension_semantics = [], scalar_prefetch = 0 : i64, scratch_operands = 0 : i64, tpu.core_type = #tpu.core_type<tc>} {
    %c0 = arith.constant 0 : index
    %c0_0 = arith.constant 0 : index
    %0 = vector.load %arg0[%c0, %c0_0] : memref<4x256xf32, #tpu.memory_space<vmem>>, vector<4x256xf32>
    %c0_1 = arith.constant 0 : index
    %c0_2 = arith.constant 0 : index
    %1 = vector.load %arg1[%c0_1, %c0_2] : memref<144x128xf32, #tpu.memory_space<vmem>>, vector<8x4xf32>
    %cst = arith.constant dense<0.000000e+00> : vector<8x256xf32>
    %2 = tpu.matmul %1, %0, %cst {dimension_numbers = #tpu.dot_dimension_numbers<[1], [0], [0], [1], [0, 0, 1, 1], [], []>} : vector<8x4xf32>, vector<4x256xf32>, vector<8x256xf32> -> vector<8x256xf32>
    %c255_i32 = arith.constant 255 : i32
    %3 = tpu.dynamic_rotate %0 by %c255_i32 dim 1 : vector<4x256xf32>, i32 -> vector<4x256xf32>
    %c8 = arith.constant 8 : index
    %c0_3 = arith.constant 0 : index
    %4 = vector.load %arg1[%c8, %c0_3] : memref<144x128xf32, #tpu.memory_space<vmem>>, vector<8x4xf32>
    %cst_4 = arith.constant dense<0.000000e+00> : vector<8x256xf32>
    %5 = tpu.matmul %4, %3, %cst_4 {dimension_numbers = #tpu.dot_dimension_numbers<[1], [0], [0], [1], [0, 0, 1, 1], [], []>} : vector<8x4xf32>, vector<4x256xf32>, vector<8x256xf32> -> vector<8x256xf32>
    %6 = arith.addf %2, %5 : vector<8x256xf32>
    %c254_i32 = arith.constant 254 : i32
    %7 = tpu.dynamic_rotate %0 by %c254_i32 dim 1 : vector<4x256xf32>, i32 -> vector<4x256xf32>
    %c16 = arith.constant 16 : index
    %c0_5 = arith.constant 0 : index
    %8 = vector.load %arg1[%c16, %c0_5] : memref<144x128xf32, #tpu.memory_space<vmem>>, vector<8x4xf32>
    %cst_6 = arith.constant dense<0.000000e+00> : vector<8x256xf32>
    %9 = tpu.matmul %8, %7, %cst_6 {dimension_numbers = #tpu.dot_dimension_numbers<[1], [0], [0], [1], [0, 0, 1, 1], [], []>} : vector<8x4xf32>, vector<4x256xf32>, vector<8x256xf32> -> vector<8x256xf32>
    %10 = arith.addf %6, %9 : vector<8x256xf32>
    %c24 = arith.constant 24 : index
    %c0_7 = arith.constant 0 : index
    %11 = vector.load %arg1[%c24, %c0_7] : memref<144x128xf32, #tpu.memory_space<vmem>>, vector<8x1xf32>
    %12 = vector.broadcast %11 : vector<8x1xf32> to vector<8x256xf32>
    %13 = arith.addf %10, %12 : vector<8x256xf32>
    %cst_8 = arith.constant 5.000000e-01 : f32
    %14 = vector.broadcast %cst_8 : f32 to vector<8x256xf32>
    %15 = arith.mulf %14, %13 : vector<8x256xf32>
    %cst_9 = arith.constant 0.707106769 : f32
    %16 = vector.broadcast %cst_9 : f32 to vector<8x256xf32>
    %17 = arith.mulf %13, %16 : vector<8x256xf32>
    %18 = math.absf %17 : vector<8x256xf32>
    %cst_10 = arith.constant 0.327591091 : f32
    %19 = vector.broadcast %cst_10 : f32 to vector<8x256xf32>
    %20 = arith.mulf %19, %18 : vector<8x256xf32>
    %cst_11 = arith.constant 1.000000e+00 : f32
    %21 = vector.broadcast %cst_11 : f32 to vector<8x256xf32>
    %22 = arith.addf %21, %20 : vector<8x256xf32>
    %23 = tpu.reciprocal %22 {approx = true} : vector<8x256xf32> -> vector<8x256xf32>
    %24 = arith.mulf %22, %23 : vector<8x256xf32>
    %cst_12 = arith.constant 2.000000e+00 : f32
    %25 = vector.broadcast %cst_12 : f32 to vector<8x256xf32>
    %26 = arith.subf %25, %24 : vector<8x256xf32>
    %27 = arith.mulf %23, %26 : vector<8x256xf32>
    %cst_13 = arith.constant 1.06140542 : f32
    %28 = vector.broadcast %cst_13 : f32 to vector<8x256xf32>
    %29 = arith.mulf %28, %27 : vector<8x256xf32>
    %cst_14 = arith.constant -1.45315206 : f32
    %30 = vector.broadcast %cst_14 : f32 to vector<8x256xf32>
    %31 = arith.addf %29, %30 : vector<8x256xf32>
    %32 = arith.mulf %31, %27 : vector<8x256xf32>
    %cst_15 = arith.constant 1.42141378 : f32
    %33 = vector.broadcast %cst_15 : f32 to vector<8x256xf32>
    %34 = arith.addf %32, %33 : vector<8x256xf32>
    %35 = arith.mulf %34, %27 : vector<8x256xf32>
    %cst_16 = arith.constant -0.284496725 : f32
    %36 = vector.broadcast %cst_16 : f32 to vector<8x256xf32>
    %37 = arith.addf %35, %36 : vector<8x256xf32>
    %38 = arith.mulf %37, %27 : vector<8x256xf32>
    %cst_17 = arith.constant 0.254829586 : f32
    %39 = vector.broadcast %cst_17 : f32 to vector<8x256xf32>
    %40 = arith.addf %38, %39 : vector<8x256xf32>
    %41 = arith.mulf %40, %27 : vector<8x256xf32>
    %cst_18 = arith.constant 0.000000e+00 : f32
    %42 = vector.broadcast %cst_18 : f32 to vector<8x256xf32>
    %43 = arith.subf %42, %18 : vector<8x256xf32>
    %44 = arith.mulf %43, %18 : vector<8x256xf32>
    %45 = math.exp %44 : vector<8x256xf32>
    %46 = arith.mulf %41, %45 : vector<8x256xf32>
    %cst_19 = arith.constant 1.000000e+00 : f32
    %47 = vector.broadcast %cst_19 : f32 to vector<8x256xf32>
    %48 = arith.subf %47, %46 : vector<8x256xf32>
    %cst_20 = arith.constant 0.000000e+00 : f32
    %49 = vector.broadcast %cst_20 : f32 to vector<8x256xf32>
    %50 = arith.cmpf oge, %17, %49 : vector<8x256xf32>
    %cst_21 = arith.constant 0.000000e+00 : f32
    %51 = vector.broadcast %cst_21 : f32 to vector<8x256xf32>
    %52 = arith.subf %51, %48 : vector<8x256xf32>
    %53 = arith.select %50, %48, %52 : vector<8x256xi1>, vector<8x256xf32>
    %cst_22 = arith.constant 1.000000e+00 : f32
    %54 = vector.broadcast %cst_22 : f32 to vector<8x256xf32>
    %55 = arith.addf %54, %53 : vector<8x256xf32>
    %56 = arith.mulf %15, %55 : vector<8x256xf32>
    %c32 = arith.constant 32 : index
    %c0_23 = arith.constant 0 : index
    %57 = vector.load %arg1[%c32, %c0_23] : memref<144x128xf32, #tpu.memory_space<vmem>>, vector<16x8xf32>
    %cst_24 = arith.constant dense<0.000000e+00> : vector<16x256xf32>
    %58 = tpu.matmul %57, %56, %cst_24 {dimension_numbers = #tpu.dot_dimension_numbers<[1], [0], [0], [1], [0, 0, 1, 1], [], []>} : vector<16x8xf32>, vector<8x256xf32>, vector<16x256xf32> -> vector<16x256xf32>
    %c255_i32_25 = arith.constant 255 : i32
    %59 = tpu.dynamic_rotate %56 by %c255_i32_25 dim 1 : vector<8x256xf32>, i32 -> vector<8x256xf32>
    %c48 = arith.constant 48 : index
    %c0_26 = arith.constant 0 : index
    %60 = vector.load %arg1[%c48, %c0_26] : memref<144x128xf32, #tpu.memory_space<vmem>>, vector<16x8xf32>
    %cst_27 = arith.constant dense<0.000000e+00> : vector<16x256xf32>
    %61 = tpu.matmul %60, %59, %cst_27 {dimension_numbers = #tpu.dot_dimension_numbers<[1], [0], [0], [1], [0, 0, 1, 1], [], []>} : vector<16x8xf32>, vector<8x256xf32>, vector<16x256xf32> -> vector<16x256xf32>
    %62 = arith.addf %58, %61 : vector<16x256xf32>
    %c254_i32_28 = arith.constant 254 : i32
    %63 = tpu.dynamic_rotate %56 by %c254_i32_28 dim 1 : vector<8x256xf32>, i32 -> vector<8x256xf32>
    %c64 = arith.constant 64 : index
    %c0_29 = arith.constant 0 : index
    %64 = vector.load %arg1[%c64, %c0_29] : memref<144x128xf32, #tpu.memory_space<vmem>>, vector<16x8xf32>
    %cst_30 = arith.constant dense<0.000000e+00> : vector<16x256xf32>
    %65 = tpu.matmul %64, %63, %cst_30 {dimension_numbers = #tpu.dot_dimension_numbers<[1], [0], [0], [1], [0, 0, 1, 1], [], []>} : vector<16x8xf32>, vector<8x256xf32>, vector<16x256xf32> -> vector<16x256xf32>
    %66 = arith.addf %62, %65 : vector<16x256xf32>
    %c80 = arith.constant 80 : index
    %c0_31 = arith.constant 0 : index
    %67 = vector.load %arg1[%c80, %c0_31] : memref<144x128xf32, #tpu.memory_space<vmem>>, vector<16x1xf32>
    %68 = vector.broadcast %67 : vector<16x1xf32> to vector<16x256xf32>
    %69 = arith.addf %66, %68 : vector<16x256xf32>
    %cst_32 = arith.constant 5.000000e-01 : f32
    %70 = vector.broadcast %cst_32 : f32 to vector<16x256xf32>
    %71 = arith.mulf %70, %69 : vector<16x256xf32>
    %cst_33 = arith.constant 0.707106769 : f32
    %72 = vector.broadcast %cst_33 : f32 to vector<16x256xf32>
    %73 = arith.mulf %69, %72 : vector<16x256xf32>
    %74 = math.absf %73 : vector<16x256xf32>
    %cst_34 = arith.constant 0.327591091 : f32
    %75 = vector.broadcast %cst_34 : f32 to vector<16x256xf32>
    %76 = arith.mulf %75, %74 : vector<16x256xf32>
    %cst_35 = arith.constant 1.000000e+00 : f32
    %77 = vector.broadcast %cst_35 : f32 to vector<16x256xf32>
    %78 = arith.addf %77, %76 : vector<16x256xf32>
    %79 = tpu.reciprocal %78 {approx = true} : vector<16x256xf32> -> vector<16x256xf32>
    %80 = arith.mulf %78, %79 : vector<16x256xf32>
    %cst_36 = arith.constant 2.000000e+00 : f32
    %81 = vector.broadcast %cst_36 : f32 to vector<16x256xf32>
    %82 = arith.subf %81, %80 : vector<16x256xf32>
    %83 = arith.mulf %79, %82 : vector<16x256xf32>
    %cst_37 = arith.constant 1.06140542 : f32
    %84 = vector.broadcast %cst_37 : f32 to vector<16x256xf32>
    %85 = arith.mulf %84, %83 : vector<16x256xf32>
    %cst_38 = arith.constant -1.45315206 : f32
    %86 = vector.broadcast %cst_38 : f32 to vector<16x256xf32>
    %87 = arith.addf %85, %86 : vector<16x256xf32>
    %88 = arith.mulf %87, %83 : vector<16x256xf32>
    %cst_39 = arith.constant 1.42141378 : f32
    %89 = vector.broadcast %cst_39 : f32 to vector<16x256xf32>
    %90 = arith.addf %88, %89 : vector<16x256xf32>
    %91 = arith.mulf %90, %83 : vector<16x256xf32>
    %cst_40 = arith.constant -0.284496725 : f32
    %92 = vector.broadcast %cst_40 : f32 to vector<16x256xf32>
    %93 = arith.addf %91, %92 : vector<16x256xf32>
    %94 = arith.mulf %93, %83 : vector<16x256xf32>
    %cst_41 = arith.constant 0.254829586 : f32
    %95 = vector.broadcast %cst_41 : f32 to vector<16x256xf32>
    %96 = arith.addf %94, %95 : vector<16x256xf32>
    %97 = arith.mulf %96, %83 : vector<16x256xf32>
    %cst_42 = arith.constant 0.000000e+00 : f32
    %98 = vector.broadcast %cst_42 : f32 to vector<16x256xf32>
    %99 = arith.subf %98, %74 : vector<16x256xf32>
    %100 = arith.mulf %99, %74 : vector<16x256xf32>
    %101 = math.exp %100 : vector<16x256xf32>
    %102 = arith.mulf %97, %101 : vector<16x256xf32>
    %cst_43 = arith.constant 1.000000e+00 : f32
    %103 = vector.broadcast %cst_43 : f32 to vector<16x256xf32>
    %104 = arith.subf %103, %102 : vector<16x256xf32>
    %cst_44 = arith.constant 0.000000e+00 : f32
    %105 = vector.broadcast %cst_44 : f32 to vector<16x256xf32>
    %106 = arith.cmpf oge, %73, %105 : vector<16x256xf32>
    %cst_45 = arith.constant 0.000000e+00 : f32
    %107 = vector.broadcast %cst_45 : f32 to vector<16x256xf32>
    %108 = arith.subf %107, %104 : vector<16x256xf32>
    %109 = arith.select %106, %104, %108 : vector<16x256xi1>, vector<16x256xf32>
    %cst_46 = arith.constant 1.000000e+00 : f32
    %110 = vector.broadcast %cst_46 : f32 to vector<16x256xf32>
    %111 = arith.addf %110, %109 : vector<16x256xf32>
    %112 = arith.mulf %71, %111 : vector<16x256xf32>
    %113 = vector.shape_cast %112 : vector<16x256xf32> to vector<16x2x128xf32>
    %114 = tpu.transpose %113, [1, 0, 2] : vector<16x2x128xf32> -> vector<2x16x128xf32>
    %115 = vector.shape_cast %114 : vector<2x16x128xf32> to vector<2x2048xf32>
    %c0_47 = arith.constant 0 : index
    %c0_48 = arith.constant 0 : index
    %116 = vector.load %arg2[%c0_47, %c0_48] : memref<2048x32xf32, #tpu.memory_space<vmem>>, vector<2048x32xf32>
    %cst_49 = arith.constant dense<0.000000e+00> : vector<2x32xf32>
    %117 = tpu.matmul %115, %116, %cst_49 {dimension_numbers = #tpu.dot_dimension_numbers<[1], [0], [0], [1], [0, 0, 1, 1], [], []>} : vector<2x2048xf32>, vector<2048x32xf32>, vector<2x32xf32> -> vector<2x32xf32>
    %c96 = arith.constant 96 : index
    %c0_50 = arith.constant 0 : index
    %118 = vector.load %arg1[%c96, %c0_50] : memref<144x128xf32, #tpu.memory_space<vmem>>, vector<1x32xf32>
    %119 = vector.broadcast %118 : vector<1x32xf32> to vector<2x32xf32>
    %120 = arith.addf %117, %119 : vector<2x32xf32>
    %cst_51 = arith.constant 5.000000e-01 : f32
    %121 = vector.broadcast %cst_51 : f32 to vector<2x32xf32>
    %122 = arith.mulf %121, %120 : vector<2x32xf32>
    %cst_52 = arith.constant 0.707106769 : f32
    %123 = vector.broadcast %cst_52 : f32 to vector<2x32xf32>
    %124 = arith.mulf %120, %123 : vector<2x32xf32>
    %125 = math.absf %124 : vector<2x32xf32>
    %cst_53 = arith.constant 0.327591091 : f32
    %126 = vector.broadcast %cst_53 : f32 to vector<2x32xf32>
    %127 = arith.mulf %126, %125 : vector<2x32xf32>
    %cst_54 = arith.constant 1.000000e+00 : f32
    %128 = vector.broadcast %cst_54 : f32 to vector<2x32xf32>
    %129 = arith.addf %128, %127 : vector<2x32xf32>
    %130 = tpu.reciprocal %129 {approx = true} : vector<2x32xf32> -> vector<2x32xf32>
    %131 = arith.mulf %129, %130 : vector<2x32xf32>
    %cst_55 = arith.constant 2.000000e+00 : f32
    %132 = vector.broadcast %cst_55 : f32 to vector<2x32xf32>
    %133 = arith.subf %132, %131 : vector<2x32xf32>
    %134 = arith.mulf %130, %133 : vector<2x32xf32>
    %cst_56 = arith.constant 1.06140542 : f32
    %135 = vector.broadcast %cst_56 : f32 to vector<2x32xf32>
    %136 = arith.mulf %135, %134 : vector<2x32xf32>
    %cst_57 = arith.constant -1.45315206 : f32
    %137 = vector.broadcast %cst_57 : f32 to vector<2x32xf32>
    %138 = arith.addf %136, %137 : vector<2x32xf32>
    %139 = arith.mulf %138, %134 : vector<2x32xf32>
    %cst_58 = arith.constant 1.42141378 : f32
    %140 = vector.broadcast %cst_58 : f32 to vector<2x32xf32>
    %141 = arith.addf %139, %140 : vector<2x32xf32>
    %142 = arith.mulf %141, %134 : vector<2x32xf32>
    %cst_59 = arith.constant -0.284496725 : f32
    %143 = vector.broadcast %cst_59 : f32 to vector<2x32xf32>
    %144 = arith.addf %142, %143 : vector<2x32xf32>
    %145 = arith.mulf %144, %134 : vector<2x32xf32>
    %cst_60 = arith.constant 0.254829586 : f32
    %146 = vector.broadcast %cst_60 : f32 to vector<2x32xf32>
    %147 = arith.addf %145, %146 : vector<2x32xf32>
    %148 = arith.mulf %147, %134 : vector<2x32xf32>
    %cst_61 = arith.constant 0.000000e+00 : f32
    %149 = vector.broadcast %cst_61 : f32 to vector<2x32xf32>
    %150 = arith.subf %149, %125 : vector<2x32xf32>
    %151 = arith.mulf %150, %125 : vector<2x32xf32>
    %152 = math.exp %151 : vector<2x32xf32>
    %153 = arith.mulf %148, %152 : vector<2x32xf32>
    %cst_62 = arith.constant 1.000000e+00 : f32
    %154 = vector.broadcast %cst_62 : f32 to vector<2x32xf32>
    %155 = arith.subf %154, %153 : vector<2x32xf32>
    %cst_63 = arith.constant 0.000000e+00 : f32
    %156 = vector.broadcast %cst_63 : f32 to vector<2x32xf32>
    %157 = arith.cmpf oge, %124, %156 : vector<2x32xf32>
    %cst_64 = arith.constant 0.000000e+00 : f32
    %158 = vector.broadcast %cst_64 : f32 to vector<2x32xf32>
    %159 = arith.subf %158, %155 : vector<2x32xf32>
    %160 = arith.select %157, %155, %159 : vector<2x32xi1>, vector<2x32xf32>
    %cst_65 = arith.constant 1.000000e+00 : f32
    %161 = vector.broadcast %cst_65 : f32 to vector<2x32xf32>
    %162 = arith.addf %161, %160 : vector<2x32xf32>
    %163 = arith.mulf %122, %162 : vector<2x32xf32>
    %c104 = arith.constant 104 : index
    %c0_66 = arith.constant 0 : index
    %164 = vector.load %arg1[%c104, %c0_66] : memref<144x128xf32, #tpu.memory_space<vmem>>, vector<32x128xf32>
    %cst_67 = arith.constant dense<0.000000e+00> : vector<2x128xf32>
    %165 = tpu.matmul %163, %164, %cst_67 {dimension_numbers = #tpu.dot_dimension_numbers<[1], [0], [0], [1], [0, 0, 1, 1], [], []>} : vector<2x32xf32>, vector<32x128xf32>, vector<2x128xf32> -> vector<2x128xf32>
    %c136 = arith.constant 136 : index
    %c0_68 = arith.constant 0 : index
    %166 = vector.load %arg1[%c136, %c0_68] : memref<144x128xf32, #tpu.memory_space<vmem>>, vector<1x128xf32>
    %167 = vector.broadcast %166 : vector<1x128xf32> to vector<2x128xf32>
    %168 = arith.addf %165, %167 : vector<2x128xf32>
    %c0_69 = arith.constant 0 : index
    %c0_70 = arith.constant 0 : index
    %169 = vector.load %arg3[%c0_69, %c0_70] : memref<2x128xf32, #tpu.memory_space<vmem>>, vector<2x128xf32>
    tpu.vector_store %arg3[%c0_69, %c0_70], %168 {strides = array<i32>} : memref<2x128xf32, #tpu.memory_space<vmem>>, vector<2x128xf32>,
    return
  }
}

</mosaic_0001>

<llo_original>
// kernel: tpu_custom_call.1
$region0: #{tpu_custom_call.1}
  #allocation0 [shape = 'u32[]', space=smem, size = 0x4, offset = 0x4, fixed_abs, tag = 'smem constant byte address 0x4 - core index']
  #allocation1 [shape = 'u32[144,128]{1,0:T(1,128)}', space=vmem, size = 0x12000, scoped, tag = 'internal scratch']
  %s0 = inlined_call_operand.vmem [shape: f32[4,256], index: 0, kind: input, shape index: {}]
  %s1 = inlined_call_operand.vmem [shape: f32[144,128], index: 1, kind: input, shape index: {}]
  %s2 = inlined_call_operand.vmem [shape: f32[2048,32], index: 2, kind: input, shape index: {}]
  %s3 = inlined_call_operand.hbm [shape: f32[2,128], index: 3, kind: output, shape index: {}]
  %s4 = sld [smem:[#allocation0]]
  $region22: #{tpu_custom_call.1} parent=0
    _
  %s6 = ssub.s32 1, %s4
  %s7 = scalar_select 0, %s6, %s4
  $region1: #{tpu_custom_call.1} parent=0
    #allocation2 [shape = 'u8[1024]{0}', space=vmem, size = 0x400, scoped, tag = 'output window, operand 0, single buffered']
    #allocation3 [shape = 's32[1]{0}', space=sflag, size = 0x4, scoped, tag = 'scoped memory for tpu_custom_call.1']
    %8 = vsyncpa [#allocation3], 0
    // Predicated region
    $region2: #{tpu_custom_call.1} parent=1 // pred_check
      _
    $region3: #{tpu_custom_call.1} parent=1 // pred_check_branch
      %10 = sbr.rel (0) target = $region5
    $region4: #{tpu_custom_call.1} parent=1 // pred_region
      _
    $region5: #{tpu_custom_call.1} parent=1 // pred_fallthru
      _
    // Predicated region
    $region6: #{tpu_custom_call.1} parent=1 // pred_check
      _
    $region7: #{tpu_custom_call.1} parent=1 // pred_check_branch
      %12 = sbr.rel (0) target = $region9
    $region8: #{tpu_custom_call.1} parent=1 // pred_region
      _
    $region9: #{tpu_custom_call.1} parent=1 // pred_fallthru
      _
    // Predicated region
    $region10: #{tpu_custom_call.1} parent=1 // pred_check
      _
    $region11: #{tpu_custom_call.1} parent=1 // pred_check_branch
      %14 = sbr.rel (0) target = $region13
    $region12: #{tpu_custom_call.1} parent=1 // pred_region
      _
    $region13: #{tpu_custom_call.1} parent=1 // pred_fallthru
      _
    %v15 = vld [vmem:[%s0] sm:$0xff]
    %v16 = vld [vmem:[%s1] sm:$0xff]
    %v18 = vcombine.high %v15, %v15
    %20 = vrot.lane.b32.xlu0 %v15, 127
    %v21 = vpop.permute.xlu0 %20
    %22 = vrot.lane.b32.xlu0 %v18, 127
    %v23 = vpop.permute.xlu0 %22
    %v24 = vlaneseq
    %v25 = vand.u32 %v24, 127
    %vm26 = vcmp.lt.s32.totalorder %v25, 127
    %v27 = vsel %vm26, %v21, %v23
    %v28 = vsel %vm26, %v23, %v21
    %v29 = vld [vmem:[%s1 + $0x8] sm:$0xff]
    %vm30 = vcmask 31744
    %v32 = vsel %vm30, %v29, 0
    %vm34 = vcmask 1043456
    %v36 = vsel %vm34, %v27, 0
    %v39 = vsel %vm34, %v28, 0
    %41 = vmatprep.subr.mxu0 %v39
    %42 = vmatpush1.msra.mxu0 %v36
    %43 = vmatprep.subr.mxu0 0.0
    %44 = vmatpush1.msra.mxu0 0.0
    %45 = vmatprep.subr.mxu0 0.0
    %46 = vmatpush1.msra.mxu0 0.0
    %47 = vmatprep.subr.mxu0 0.0
    %48 = vmatpush1.msra.mxu0 0.0
    %49 = vmatprep.subr.mxu0 0.0
    %50 = vmatpush1.msra.mxu0 0.0
    %51 = vmatprep.subr.mxu0 0.0
    %52 = vmatpush1.msra.mxu0 0.0
    %53 = vmatprep.subr.mxu0 0.0
    %54 = vmatpush1.msra.mxu0 0.0
    %55 = vmatprep.subr.mxu0 0.0
    %56 = vmatpush1.msra.mxu0 0.0
    %57 = vmatprep.subr.mxu0 0.0
    %58 = vmatpush1.msra.mxu0 0.0
    %59 = vmatprep.subr.mxu0 0.0
    %60 = vmatpush1.msra.mxu0 0.0
    %61 = vmatprep.subr.mxu0 0.0
    %62 = vmatpush1.msra.mxu0 0.0
    %63 = vmatprep.subr.mxu0 0.0
    %64 = vmatpush1.msra.mxu0 0.0
    %65 = vmatprep.subr.mxu0 0.0
    %66 = vmatpush1.msra.mxu0 0.0
    %67 = vmatprep.subr.mxu0 0.0
    %68 = vmatpush1.msra.mxu0 0.0
    %69 = vmatprep.subr.mxu0 0.0
    %70 = vmatpush1.msra.mxu0 0.0
    %71 = vmatprep.subr.mxu0 0.0
    %72 = vmatpush1.msra.mxu0 0.0
    %73 = vmatprep.subr.mxu0 0.0
    %74 = vmatpush1.msra.mxu0 0.0
    %75 = vmatprep.subr.mxu0 0.0
    %76 = vmatpush1.msra.mxu0 0.0
    %77 = vmatprep.subr.mxu0 0.0
    %78 = vmatpush1.msra.mxu0 0.0
    %79 = vmatprep.subr.mxu0 0.0
    %80 = vmatpush1.msra.mxu0 0.0
    %81 = vmatprep.subr.mxu0 0.0
    %82 = vmatpush1.msra.mxu0 0.0
    %83 = vmatprep.subr.mxu0 0.0
    %84 = vmatpush1.msra.mxu0 0.0
    %85 = vmatprep.subr.mxu0 0.0
    %86 = vmatpush1.msra.mxu0 0.0
    %87 = vmatprep.subr.mxu0 0.0
    %88 = vmatpush1.msra.mxu0 0.0
    %89 = vmatprep.subr.mxu0 0.0
    %90 = vmatpush1.msra.mxu0 0.0
    %91 = vmatprep.subr.mxu0 0.0
    %92 = vmatpush1.msra.mxu0 0.0
    %93 = vmatprep.subr.mxu0 0.0
    %94 = vmatpush1.msra.mxu0 0.0
    %95 = vmatprep.subr.mxu0 0.0
    %96 = vmatpush1.msra.mxu0 0.0
    %97 = vmatprep.subr.mxu0 0.0
    %98 = vmatpush1.msra.mxu0 0.0
    %99 = vmatprep.subr.mxu0 0.0
    %100 = vmatpush1.msra.mxu0 0.0
    %101 = vmatprep.subr.mxu0 0.0
    %102 = vmatpush1.msra.mxu0 0.0
    %103 = vmatprep.subr.mxu0 0.0
    %104 = vmatpush1.msra.mxu0 0.0
    %105 = vmatprep.mubr.f32.mxu0 0.0
    %106 = vmatmul.mubr.f32.gmra.mrb[0].mxu0 %v32
    %v107 = vpop.f32.mrb[0].mxu0
    %v108 = vadd.f32 0.0, %v107
    %v109 = vpop.f32.mrb[0].mxu0
    %v110 = vadd.f32 0.0, %v109
    %111 = vdwg.mxu0
    %v113 = vsel %vm30, %v16, 0
    %v115 = vsel %vm34, %v15, 0
    %v117 = vsel %vm34, %v18, 0
    %119 = vmatprep.subr.mxu0 %v117
    %120 = vmatpush1.msra.mxu0 %v115
    %121 = vmatprep.subr.mxu0 0.0
    %122 = vmatpush1.msra.mxu0 0.0
    %123 = vmatprep.subr.mxu0 0.0
    %124 = vmatpush1.msra.mxu0 0.0
    %125 = vmatprep.subr.mxu0 0.0
    %126 = vmatpush1.msra.mxu0 0.0
    %127 = vmatprep.subr.mxu0 0.0
    %128 = vmatpush1.msra.mxu0 0.0
    %129 = vmatprep.subr.mxu0 0.0
    %130 = vmatpush1.msra.mxu0 0.0
    %131 = vmatprep.subr.mxu0 0.0
    %132 = vmatpush1.msra.mxu0 0.0
    %133 = vmatprep.subr.mxu0 0.0
    %134 = vmatpush1.msra.mxu0 0.0
    %135 = vmatprep.subr.mxu0 0.0
    %136 = vmatpush1.msra.mxu0 0.0
    %137 = vmatprep.subr.mxu0 0.0
    %138 = vmatpush1.msra.mxu0 0.0
    %139 = vmatprep.subr.mxu0 0.0
    %140 = vmatpush1.msra.mxu0 0.0
    %141 = vmatprep.subr.mxu0 0.0
    %142 = vmatpush1.msra.mxu0 0.0
    %143 = vmatprep.subr.mxu0 0.0
    %144 = vmatpush1.msra.mxu0 0.0
    %145 = vmatprep.subr.mxu0 0.0
    %146 = vmatpush1.msra.mxu0 0.0
    %147 = vmatprep.subr.mxu0 0.0
    %148 = vmatpush1.msra.mxu0 0.0
    %149 = vmatprep.subr.mxu0 0.0
    %150 = vmatpush1.msra.mxu0 0.0
    %151 = vmatprep.subr.mxu0 0.0
    %152 = vmatpush1.msra.mxu0 0.0
    %153 = vmatprep.subr.mxu0 0.0
    %154 = vmatpush1.msra.mxu0 0.0
    %155 = vmatprep.subr.mxu0 0.0
    %156 = vmatpush1.msra.mxu0 0.0
    %157 = vmatprep.subr.mxu0 0.0
    %158 = vmatpush1.msra.mxu0 0.0
    %159 = vmatprep.subr.mxu0 0.0
    %160 = vmatpush1.msra.mxu0 0.0
    %161 = vmatprep.subr.mxu0 0.0
    %162 = vmatpush1.msra.mxu0 0.0
    %163 = vmatprep.subr.mxu0 0.0
    %164 = vmatpush1.msra.mxu0 0.0
    %165 = vmatprep.subr.mxu0 0.0
    %166 = vmatpush1.msra.mxu0 0.0
    %167 = vmatprep.subr.mxu0 0.0
    %168 = vmatpush1.msra.mxu0 0.0
    %169 = vmatprep.subr.mxu0 0.0
    %170 = vmatpush1.msra.mxu0 0.0
    %171 = vmatprep.subr.mxu0 0.0
    %172 = vmatpush1.msra.mxu0 0.0
    %173 = vmatprep.subr.mxu0 0.0
    %174 = vmatpush1.msra.mxu0 0.0
    %175 = vmatprep.subr.mxu0 0.0
    %176 = vmatpush1.msra.mxu0 0.0
    %177 = vmatprep.subr.mxu0 0.0
    %178 = vmatpush1.msra.mxu0 0.0
    %179 = vmatprep.subr.mxu0 0.0
    %180 = vmatpush1.msra.mxu0 0.0
    %181 = vmatprep.subr.mxu0 0.0
    %182 = vmatpush1.msra.mxu0 0.0
    %183 = vmatprep.mubr.f32.mxu0 0.0
    %184 = vmatmul.mubr.f32.gmra.mrb[0].mxu0 %v113
    %v185 = vpop.f32.mrb[0].mxu0
    %v186 = vadd.f32 %v108, %v185
    %v187 = vpop.f32.mrb[0].mxu0
    %v188 = vadd.f32 %v110, %v187
    %189 = vdwg.mxu0
    %190 = vrot.lane.b32.xlu0 %v15, 126
    %v191 = vpop.permute.xlu0 %190
    %192 = vrot.lane.b32.xlu0 %v18, 126
    %v193 = vpop.permute.xlu0 %192
    %vm194 = vcmp.lt.s32.totalorder %v25, 126
    %v195 = vsel %vm194, %v191, %v193
    %v196 = vsel %vm194, %v193, %v191
    %v197 = vld [vmem:[%s1 + $0x10] sm:$0xff]
    %v199 = vsel %vm30, %v197, 0
    %v202 = vsel %vm34, %v195, 0
    %v205 = vsel %vm34, %v196, 0
    %207 = vmatprep.subr.mxu0 %v205
    %208 = vmatpush1.msra.mxu0 %v202
    %209 = vmatprep.subr.mxu0 0.0
    %210 = vmatpush1.msra.mxu0 0.0
    %211 = vmatprep.subr.mxu0 0.0
    %212 = vmatpush1.msra.mxu0 0.0
    %213 = vmatprep.subr.mxu0 0.0
    %214 = vmatpush1.msra.mxu0 0.0
    %215 = vmatprep.subr.mxu0 0.0
    %216 = vmatpush1.msra.mxu0 0.0
    %217 = vmatprep.subr.mxu0 0.0
    %218 = vmatpush1.msra.mxu0 0.0
    %219 = vmatprep.subr.mxu0 0.0
    %220 = vmatpush1.msra.mxu0 0.0
    %221 = vmatprep.subr.mxu0 0.0
    %222 = vmatpush1.msra.mxu0 0.0
    %223 = vmatprep.subr.mxu0 0.0
    %224 = vmatpush1.msra.mxu0 0.0
    %225 = vmatprep.subr.mxu0 0.0
    %226 = vmatpush1.msra.mxu0 0.0
    %227 = vmatprep.subr.mxu0 0.0
    %228 = vmatpush1.msra.mxu0 0.0
    %229 = vmatprep.subr.mxu0 0.0
    %230 = vmatpush1.msra.mxu0 0.0
    %231 = vmatprep.subr.mxu0 0.0
    %232 = vmatpush1.msra.mxu0 0.0
    %233 = vmatprep.subr.mxu0 0.0
    %234 = vmatpush1.msra.mxu0 0.0
    %235 = vmatprep.subr.mxu0 0.0
    %236 = vmatpush1.msra.mxu0 0.0
    %237 = vmatprep.subr.mxu0 0.0
    %238 = vmatpush1.msra.mxu0 0.0
    %239 = vmatprep.subr.mxu0 0.0
    %240 = vmatpush1.msra.mxu0 0.0
    %241 = vmatprep.subr.mxu0 0.0
    %242 = vmatpush1.msra.mxu0 0.0
    %243 = vmatprep.subr.mxu0 0.0
    %244 = vmatpush1.msra.mxu0 0.0
    %245 = vmatprep.subr.mxu0 0.0
    %246 = vmatpush1.msra.mxu0 0.0
    %247 = vmatprep.subr.mxu0 0.0
    %248 = vmatpush1.msra.mxu0 0.0
    %249 = vmatprep.subr.mxu0 0.0
    %250 = vmatpush1.msra.mxu0 0.0
    %251 = vmatprep.subr.mxu0 0.0
    %252 = vmatpush1.msra.mxu0 0.0
    %253 = vmatprep.subr.mxu0 0.0
    %254 = vmatpush1.msra.mxu0 0.0
    %255 = vmatprep.subr.mxu0 0.0
    %256 = vmatpush1.msra.mxu0 0.0
    %257 = vmatprep.subr.mxu0 0.0
    %258 = vmatpush1.msra.mxu0 0.0
    %259 = vmatprep.subr.mxu0 0.0
    %260 = vmatpush1.msra.mxu0 0.0
    %261 = vmatprep.subr.mxu0 0.0
    %262 = vmatpush1.msra.mxu0 0.0
    %263 = vmatprep.subr.mxu0 0.0
    %264 = vmatpush1.msra.mxu0 0.0
    %265 = vmatprep.subr.mxu0 0.0
    %266 = vmatpush1.msra.mxu0 0.0
    %267 = vmatprep.subr.mxu0 0.0
    %268 = vmatpush1.msra.mxu0 0.0
    %269 = vmatprep.subr.mxu0 0.0
    %270 = vmatpush1.msra.mxu0 0.0
    %271 = vmatprep.mubr.f32.mxu0 0.0
    %272 = vmatmul.mubr.f32.gmra.mrb[0].mxu0 %v199
    %v273 = vpop.f32.mrb[0].mxu0
    %v274 = vadd.f32 0.0, %v273
    %v275 = vpop.f32.mrb[0].mxu0
    %v276 = vadd.f32 0.0, %v275
    %277 = vdwg.mxu0
    %v278 = vadd.f32 %v186, %v274
    %v279 = vadd.f32 %v188, %v276
    %v280 = vld [vmem:[%s1 + $0x18] sm:$0xff]
    %282 = vset.pattern.permute.xlu0 0
    %283 = vperm.xlu0 %282, %v280
    %v284 = vpop.permute.xlu0 %283
    %v286 = vadd.f32 %v278, %v284
    %v287 = vadd.f32 %v279, %v284
    %v288 = vmul.f32 %v286, 0.5
    %v289 = vmul.f32 %v287, 0.5
    %v290 = vmul.f32 %v286, 0.70710677
    %v291 = vmul.f32 %v287, 0.70710677
    %v292 = vand.u32 2147483647, %v290
    %v293 = vand.u32 2147483647, %v291
    %v294 = vmul.f32 %v292, 0.3275911
    %v295 = vmul.f32 %v293, 0.3275911
    %v296 = vadd.f32 %v294, 1.0
    %v297 = vadd.f32 %v295, 1.0
    %v298 = vrcp.pop %v296
    %v299 = vrcp.pop %v297
    %v300 = vmul.f32 %v296, %v298
    %v301 = vmul.f32 %v297, %v299
    %v302 = vsub.f32 2.0, %v300
    %v303 = vsub.f32 2.0, %v301
    %v304 = vmul.f32 %v298, %v302
    %v305 = vmul.f32 %v299, %v303
    %v306 = vmul.f32 %v304, 1.0614054
    %v307 = vmul.f32 %v305, 1.0614054
    %v308 = vadd.f32 %v306, -1.4531521
    %v309 = vadd.f32 %v307, -1.4531521
    %v310 = vmul.f32 %v308, %v304
    %v311 = vmul.f32 %v309, %v305
    %v312 = vadd.f32 %v310, 1.4214138
    %v313 = vadd.f32 %v311, 1.4214138
    %v314 = vmul.f32 %v312, %v304
    %v315 = vmul.f32 %v313, %v305
    %v316 = vadd.f32 %v314, -0.28449672
    %v317 = vadd.f32 %v315, -0.28449672
    %v318 = vmul.f32 %v316, %v304
    %v319 = vmul.f32 %v317, %v305
    %v320 = vadd.f32 %v318, 0.2548296
    %v321 = vadd.f32 %v319, 0.2548296
    %v322 = vmul.f32 %v320, %v304
    %v323 = vmul.f32 %v321, %v305
    %v324 = vsub.f32 0.0, %v292
    %v325 = vsub.f32 0.0, %v293
    %v326 = vmul.f32 %v324, %v292
    %v327 = vmul.f32 %v325, %v293
    %v328 = vmul.f32 %v326, 1.442695
    %v329 = vpow.pop %v328
    %v330 = vmul.f32 %v327, 1.442695
    %v331 = vpow.pop %v330
    %v332 = vmul.f32 %v322, %v329
    %v333 = vmul.f32 %v323, %v331
    %v334 = vsub.f32 1.0, %v332
    %v335 = vsub.f32 1.0, %v333
    %vm336 = vcmp.ge.f32.partialorder %v290, 0.0
    %vm337 = vcmp.ge.f32.partialorder %v291, 0.0
    %v338 = vsub.f32 0.0, %v334
    %v339 = vsub.f32 0.0, %v335
    %v340 = vsel %vm336, %v334, %v338
    %v341 = vsel %vm337, %v335, %v339
    %v342 = vadd.f32 %v340, 1.0
    %v343 = vadd.f32 %v341, 1.0
    %v344 = vmul.f32 %v288, %v342
    %v345 = vmul.f32 %v289, %v343
    %v346 = vld [vmem:[%s1 + $0x20] sm:$0xff]
    %v347 = vld [vmem:[%s1 + $0x28] sm:$0xff]
    %348 = vrot.lane.b32.xlu0 %v344, 127
    %v349 = vpop.permute.xlu0 %348
    %350 = vrot.lane.b32.xlu0 %v345, 127
    %v351 = vpop.permute.xlu0 %350
    %v352 = vsel %vm26, %v349, %v351
    %v353 = vsel %vm26, %v351, %v349
    %v354 = vld [vmem:[%s1 + $0x30] sm:$0xff]
    %v355 = vld [vmem:[%s1 + $0x38] sm:$0xff]
    %vm356 = vcmask 64512
    %v358 = vsel %vm356, %v354, 0
    %v361 = vsel %vm356, %v355, 0
    %363 = vmatprep.subr.mxu0 %v353
    %364 = vmatpush1.msra.mxu0 %v352
    %365 = vmatprep.subr.mxu0 0.0
    %366 = vmatpush1.msra.mxu0 0.0
    %367 = vmatprep.subr.mxu0 0.0
    %368 = vmatpush1.msra.mxu0 0.0
    %369 = vmatprep.subr.mxu0 0.0
    %370 = vmatpush1.msra.mxu0 0.0
    %371 = vmatprep.subr.mxu0 0.0
    %372 = vmatpush1.msra.mxu0 0.0
    %373 = vmatprep.subr.mxu0 0.0
    %374 = vmatpush1.msra.mxu0 0.0
    %375 = vmatprep.subr.mxu0 0.0
    %376 = vmatpush1.msra.mxu0 0.0
    %377 = vmatprep.subr.mxu0 0.0
    %378 = vmatpush1.msra.mxu0 0.0
    %379 = vmatprep.subr.mxu0 0.0
    %380 = vmatpush1.msra.mxu0 0.0
    %381 = vmatprep.subr.mxu0 0.0
    %382 = vmatpush1.msra.mxu0 0.0
    %383 = vmatprep.subr.mxu0 0.0
    %384 = vmatpush1.msra.mxu0 0.0
    %385 = vmatprep.subr.mxu0 0.0
    %386 = vmatpush1.msra.mxu0 0.0
    %387 = vmatprep.subr.mxu0 0.0
    %388 = vmatpush1.msra.mxu0 0.0
    %389 = vmatprep.subr.mxu0 0.0
    %390 = vmatpush1.msra.mxu0 0.0
    %391 = vmatprep.subr.mxu0 0.0
    %392 = vmatpush1.msra.mxu0 0.0
    %393 = vmatprep.subr.mxu0 0.0
    %394 = vmatpush1.msra.mxu0 0.0
    %395 = vmatprep.subr.mxu0 0.0
    %396 = vmatpush1.msra.mxu0 0.0
    %397 = vmatprep.subr.mxu0 0.0
    %398 = vmatpush1.msra.mxu0 0.0
    %399 = vmatprep.subr.mxu0 0.0
    %400 = vmatpush1.msra.mxu0 0.0
    %401 = vmatprep.subr.mxu0 0.0
    %402 = vmatpush1.msra.mxu0 0.0
    %403 = vmatprep.subr.mxu0 0.0
    %404 = vmatpush1.msra.mxu0 0.0
    %405 = vmatprep.subr.mxu0 0.0
    %406 = vmatpush1.msra.mxu0 0.0
    %407 = vmatprep.subr.mxu0 0.0
    %408 = vmatpush1.msra.mxu0 0.0
    %409 = vmatprep.subr.mxu0 0.0
    %410 = vmatpush1.msra.mxu0 0.0
    %411 = vmatprep.subr.mxu0 0.0
    %412 = vmatpush1.msra.mxu0 0.0
    %413 = vmatprep.subr.mxu0 0.0
    %414 = vmatpush1.msra.mxu0 0.0
    %415 = vmatprep.subr.mxu0 0.0
    %416 = vmatpush1.msra.mxu0 0.0
    %417 = vmatprep.subr.mxu0 0.0
    %418 = vmatpush1.msra.mxu0 0.0
    %419 = vmatprep.subr.mxu0 0.0
    %420 = vmatpush1.msra.mxu0 0.0
    %421 = vmatprep.subr.mxu0 0.0
    %422 = vmatpush1.msra.mxu0 0.0
    %423 = vmatprep.subr.mxu0 0.0
    %424 = vmatpush1.msra.mxu0 0.0
    %425 = vmatprep.subr.mxu0 0.0
    %426 = vmatpush1.msra.mxu0 0.0
    %427 = vmatprep.mubr.f32.mxu0 0.0
    %428 = vmatmul.mubr.f32.gmra.mrb[0].mxu0 %v358
    %v429 = vpop.f32.mrb[0].mxu0
    %v430 = vadd.f32 0.0, %v429
    %v431 = vpop.f32.mrb[0].mxu0
    %v432 = vadd.f32 0.0, %v431
    %433 = vmatprep.mubr.f32.mxu0 0.0
    %434 = vmatmul.mubr.f32.gmra.mrb[0].mxu0 %v361
    %v435 = vpop.f32.mrb[0].mxu0
    %v436 = vadd.f32 0.0, %v435
    %v437 = vpop.f32.mrb[0].mxu0
    %v438 = vadd.f32 0.0, %v437
    %439 = vdwg.mxu0
    %v441 = vsel %vm356, %v346, 0
    %v444 = vsel %vm356, %v347, 0
    %446 = vmatprep.subr.mxu0 %v345
    %447 = vmatpush1.msra.mxu0 %v344
    %448 = vmatprep.subr.mxu0 0.0
    %449 = vmatpush1.msra.mxu0 0.0
    %450 = vmatprep.subr.mxu0 0.0
    %451 = vmatpush1.msra.mxu0 0.0
    %452 = vmatprep.subr.mxu0 0.0
    %453 = vmatpush1.msra.mxu0 0.0
    %454 = vmatprep.subr.mxu0 0.0
    %455 = vmatpush1.msra.mxu0 0.0
    %456 = vmatprep.subr.mxu0 0.0
    %457 = vmatpush1.msra.mxu0 0.0
    %458 = vmatprep.subr.mxu0 0.0
    %459 = vmatpush1.msra.mxu0 0.0
    %460 = vmatprep.subr.mxu0 0.0
    %461 = vmatpush1.msra.mxu0 0.0
    %462 = vmatprep.subr.mxu0 0.0
    %463 = vmatpush1.msra.mxu0 0.0
    %464 = vmatprep.subr.mxu0 0.0
    %465 = vmatpush1.msra.mxu0 0.0
    %466 = vmatprep.subr.mxu0 0.0
    %467 = vmatpush1.msra.mxu0 0.0
    %468 = vmatprep.subr.mxu0 0.0
    %469 = vmatpush1.msra.mxu0 0.0
    %470 = vmatprep.subr.mxu0 0.0
    %471 = vmatpush1.msra.mxu0 0.0
    %472 = vmatprep.subr.mxu0 0.0
    %473 = vmatpush1.msra.mxu0 0.0
    %474 = vmatprep.subr.mxu0 0.0
    %475 = vmatpush1.msra.mxu0 0.0
    %476 = vmatprep.subr.mxu0 0.0
    %477 = vmatpush1.msra.mxu0 0.0
    %478 = vmatprep.subr.mxu0 0.0
    %479 = vmatpush1.msra.mxu0 0.0
    %480 = vmatprep.subr.mxu0 0.0
    %481 = vmatpush1.msra.mxu0 0.0
    %482 = vmatprep.subr.mxu0 0.0
    %483 = vmatpush1.msra.mxu0 0.0
    %484 = vmatprep.subr.mxu0 0.0
    %485 = vmatpush1.msra.mxu0 0.0
    %486 = vmatprep.subr.mxu0 0.0
    %487 = vmatpush1.msra.mxu0 0.0
    %488 = vmatprep.subr.mxu0 0.0
    %489 = vmatpush1.msra.mxu0 0.0
    %490 = vmatprep.subr.mxu0 0.0
    %491 = vmatpush1.msra.mxu0 0.0
    %492 = vmatprep.subr.mxu0 0.0
    %493 = vmatpush1.msra.mxu0 0.0
    %494 = vmatprep.subr.mxu0 0.0
    %495 = vmatpush1.msra.mxu0 0.0
    %496 = vmatprep.subr.mxu0 0.0
    %497 = vmatpush1.msra.mxu0 0.0
    %498 = vmatprep.subr.mxu0 0.0
    %499 = vmatpush1.msra.mxu0 0.0
    %500 = vmatprep.subr.mxu0 0.0
    %501 = vmatpush1.msra.mxu0 0.0
    %502 = vmatprep.subr.mxu0 0.0
    %503 = vmatpush1.msra.mxu0 0.0
    %504 = vmatprep.subr.mxu0 0.0
    %505 = vmatpush1.msra.mxu0 0.0
    %506 = vmatprep.subr.mxu0 0.0
    %507 = vmatpush1.msra.mxu0 0.0
    %508 = vmatprep.subr.mxu0 0.0
    %509 = vmatpush1.msra.mxu0 0.0
    %510 = vmatprep.mubr.f32.mxu0 0.0
    %511 = vmatmul.mubr.f32.gmra.mrb[0].mxu0 %v441
    %v512 = vpop.f32.mrb[0].mxu0
    %v513 = vadd.f32 %v430, %v512
    %v514 = vpop.f32.mrb[0].mxu0
    %v515 = vadd.f32 %v432, %v514
    %516 = vmatprep.mubr.f32.mxu0 0.0
    %517 = vmatmul.mubr.f32.gmra.mrb[0].mxu0 %v444
    %v518 = vpop.f32.mrb[0].mxu0
    %v519 = vadd.f32 %v436, %v518
    %v520 = vpop.f32.mrb[0].mxu0
    %v521 = vadd.f32 %v438, %v520
    %522 = vdwg.mxu0
    %523 = vrot.lane.b32.xlu0 %v344, 126
    %v524 = vpop.permute.xlu0 %523
    %525 = vrot.lane.b32.xlu0 %v345, 126
    %v526 = vpop.permute.xlu0 %525
    %v527 = vsel %vm194, %v524, %v526
    %v528 = vsel %vm194, %v526, %v524
    %v529 = vld [vmem:[%s1 + $0x40] sm:$0xff]
    %v530 = vld [vmem:[%s1 + $0x48] sm:$0xff]
    %v532 = vsel %vm356, %v529, 0
    %v535 = vsel %vm356, %v530, 0
    %537 = vmatprep.subr.mxu0 %v528
    %538 = vmatpush1.msra.mxu0 %v527
    %539 = vmatprep.subr.mxu0 0.0
    %540 = vmatpush1.msra.mxu0 0.0
    %541 = vmatprep.subr.mxu0 0.0
    %542 = vmatpush1.msra.mxu0 0.0
    %543 = vmatprep.subr.mxu0 0.0
    %544 = vmatpush1.msra.mxu0 0.0
    %545 = vmatprep.subr.mxu0 0.0
    %546 = vmatpush1.msra.mxu0 0.0
    %547 = vmatprep.subr.mxu0 0.0
    %548 = vmatpush1.msra.mxu0 0.0
    %549 = vmatprep.subr.mxu0 0.0
    %550 = vmatpush1.msra.mxu0 0.0
    %551 = vmatprep.subr.mxu0 0.0
    %552 = vmatpush1.msra.mxu0 0.0
    %553 = vmatprep.subr.mxu0 0.0
    %554 = vmatpush1.msra.mxu0 0.0
    %555 = vmatprep.subr.mxu0 0.0
    %556 = vmatpush1.msra.mxu0 0.0
    %557 = vmatprep.subr.mxu0 0.0
    %558 = vmatpush1.msra.mxu0 0.0
    %559 = vmatprep.subr.mxu0 0.0
    %560 = vmatpush1.msra.mxu0 0.0
    %561 = vmatprep.subr.mxu0 0.0
    %562 = vmatpush1.msra.mxu0 0.0
    %563 = vmatprep.subr.mxu0 0.0
    %564 = vmatpush1.msra.mxu0 0.0
    %565 = vmatprep.subr.mxu0 0.0
    %566 = vmatpush1.msra.mxu0 0.0
    %567 = vmatprep.subr.mxu0 0.0
    %568 = vmatpush1.msra.mxu0 0.0
    %569 = vmatprep.subr.mxu0 0.0
    %570 = vmatpush1.msra.mxu0 0.0
    %571 = vmatprep.subr.mxu0 0.0
    %572 = vmatpush1.msra.mxu0 0.0
    %573 = vmatprep.subr.mxu0 0.0
    %574 = vmatpush1.msra.mxu0 0.0
    %575 = vmatprep.subr.mxu0 0.0
    %576 = vmatpush1.msra.mxu0 0.0
    %577 = vmatprep.subr.mxu0 0.0
    %578 = vmatpush1.msra.mxu0 0.0
    %579 = vmatprep.subr.mxu0 0.0
    %580 = vmatpush1.msra.mxu0 0.0
    %581 = vmatprep.subr.mxu0 0.0
    %582 = vmatpush1.msra.mxu0 0.0
    %583 = vmatprep.subr.mxu0 0.0
    %584 = vmatpush1.msra.mxu0 0.0
    %585 = vmatprep.subr.mxu0 0.0
    %586 = vmatpush1.msra.mxu0 0.0
    %587 = vmatprep.subr.mxu0 0.0
    %588 = vmatpush1.msra.mxu0 0.0
    %589 = vmatprep.subr.mxu0 0.0
    %590 = vmatpush1.msra.mxu0 0.0
    %591 = vmatprep.subr.mxu0 0.0
    %592 = vmatpush1.msra.mxu0 0.0
    %593 = vmatprep.subr.mxu0 0.0
    %594 = vmatpush1.msra.mxu0 0.0
    %595 = vmatprep.subr.mxu0 0.0
    %596 = vmatpush1.msra.mxu0 0.0
    %597 = vmatprep.subr.mxu0 0.0
    %598 = vmatpush1.msra.mxu0 0.0
    %599 = vmatprep.subr.mxu0 0.0
    %600 = vmatpush1.msra.mxu0 0.0
    %601 = vmatprep.mubr.f32.mxu0 0.0
    %602 = vmatmul.mubr.f32.gmra.mrb[0].mxu0 %v532
    %v603 = vpop.f32.mrb[0].mxu0
    %v604 = vadd.f32 0.0, %v603
    %v605 = vpop.f32.mrb[0].mxu0
    %v606 = vadd.f32 0.0, %v605
    %607 = vmatprep.mubr.f32.mxu0 0.0
    %608 = vmatmul.mubr.f32.gmra.mrb[0].mxu0 %v535
    %v609 = vpop.f32.mrb[0].mxu0
    %v610 = vadd.f32 0.0, %v609
    %v611 = vpop.f32.mrb[0].mxu0
    %v612 = vadd.f32 0.0, %v611
    %613 = vdwg.mxu0
    %v614 = vadd.f32 %v513, %v604
    %v615 = vadd.f32 %v515, %v606
    %v616 = vadd.f32 %v519, %v610
    %v617 = vadd.f32 %v521, %v612
    %v618 = vld [vmem:[%s1 + $0x50] sm:$0xff]
    %v619 = vld [vmem:[%s1 + $0x58] sm:$0xff]
    %621 = vset.pattern.permute.xlu0 0
    %622 = vperm.xlu0 %621, %v618
    %v623 = vpop.permute.xlu0 %622
    %626 = vset.pattern.permute.xlu0 0
    %627 = vperm.xlu0 %626, %v619
    %v628 = vpop.permute.xlu0 %627
    %v630 = vadd.f32 %v614, %v623
    %v631 = vadd.f32 %v615, %v623
    %v632 = vadd.f32 %v616, %v628
    %v633 = vadd.f32 %v617, %v628
    %v634 = vmul.f32 %v630, 0.5
    %v635 = vmul.f32 %v631, 0.5
    %v636 = vmul.f32 %v632, 0.5
    %v637 = vmul.f32 %v633, 0.5
    %v638 = vmul.f32 %v630, 0.70710677
    %v639 = vmul.f32 %v631, 0.70710677
    %v640 = vmul.f32 %v632, 0.70710677
    %v641 = vmul.f32 %v633, 0.70710677
    %v642 = vand.u32 2147483647, %v638
    %v643 = vand.u32 2147483647, %v639
    %v644 = vand.u32 2147483647, %v640
    %v645 = vand.u32 2147483647, %v641
    %v646 = vmul.f32 %v642, 0.3275911
    %v647 = vmul.f32 %v643, 0.3275911
    %v648 = vmul.f32 %v644, 0.3275911
    %v649 = vmul.f32 %v645, 0.3275911
    %v650 = vadd.f32 %v646, 1.0
    %v651 = vadd.f32 %v647, 1.0
    %v652 = vadd.f32 %v648, 1.0
    %v653 = vadd.f32 %v649, 1.0
    %v654 = vrcp.pop %v650
    %v655 = vrcp.pop %v651
    %v656 = vrcp.pop %v652
    %v657 = vrcp.pop %v653
    %v658 = vmul.f32 %v650, %v654
    %v659 = vmul.f32 %v651, %v655
    %v660 = vmul.f32 %v652, %v656
    %v661 = vmul.f32 %v653, %v657
    %v662 = vsub.f32 2.0, %v658
    %v663 = vsub.f32 2.0, %v659
    %v664 = vsub.f32 2.0, %v660
    %v665 = vsub.f32 2.0, %v661
    %v666 = vmul.f32 %v654, %v662
    %v667 = vmul.f32 %v655, %v663
    %v668 = vmul.f32 %v656, %v664
    %v669 = vmul.f32 %v657, %v665
    %v670 = vmul.f32 %v666, 1.0614054
    %v671 = vmul.f32 %v667, 1.0614054
    %v672 = vmul.f32 %v668, 1.0614054
    %v673 = vmul.f32 %v669, 1.0614054
    %v674 = vadd.f32 %v670, -1.4531521
    %v675 = vadd.f32 %v671, -1.4531521
    %v676 = vadd.f32 %v672, -1.4531521
    %v677 = vadd.f32 %v673, -1.4531521
    %v678 = vmul.f32 %v674, %v666
    %v679 = vmul.f32 %v675, %v667
    %v680 = vmul.f32 %v676, %v668
    %v681 = vmul.f32 %v677, %v669
    %v682 = vadd.f32 %v678, 1.4214138
    %v683 = vadd.f32 %v679, 1.4214138
    %v684 = vadd.f32 %v680, 1.4214138
    %v685 = vadd.f32 %v681, 1.4214138
    %v686 = vmul.f32 %v682, %v666
    %v687 = vmul.f32 %v683, %v667
    %v688 = vmul.f32 %v684, %v668
    %v689 = vmul.f32 %v685, %v669
    %v690 = vadd.f32 %v686, -0.28449672
    %v691 = vadd.f32 %v687, -0.28449672
    %v692 = vadd.f32 %v688, -0.28449672
    %v693 = vadd.f32 %v689, -0.28449672
    %v694 = vmul.f32 %v690, %v666
    %v695 = vmul.f32 %v691, %v667
    %v696 = vmul.f32 %v692, %v668
    %v697 = vmul.f32 %v693, %v669
    %v698 = vadd.f32 %v694, 0.2548296
    %v699 = vadd.f32 %v695, 0.2548296
    %v700 = vadd.f32 %v696, 0.2548296
    %v701 = vadd.f32 %v697, 0.2548296
    %v702 = vmul.f32 %v698, %v666
    %v703 = vmul.f32 %v699, %v667
    %v704 = vmul.f32 %v700, %v668
    %v705 = vmul.f32 %v701, %v669
    %v706 = vsub.f32 0.0, %v642
    %v707 = vsub.f32 0.0, %v643
    %v708 = vsub.f32 0.0, %v644
    %v709 = vsub.f32 0.0, %v645
    %v710 = vmul.f32 %v706, %v642
    %v711 = vmul.f32 %v707, %v643
    %v712 = vmul.f32 %v708, %v644
    %v713 = vmul.f32 %v709, %v645
    %v714 = vmul.f32 %v710, 1.442695
    %v715 = vpow.pop %v714
    %v716 = vmul.f32 %v711, 1.442695
    %v717 = vpow.pop %v716
    %v718 = vmul.f32 %v712, 1.442695
    %v719 = vpow.pop %v718
    %v720 = vmul.f32 %v713, 1.442695
    %v721 = vpow.pop %v720
    %v722 = vmul.f32 %v702, %v715
    %v723 = vmul.f32 %v703, %v717
    %v724 = vmul.f32 %v704, %v719
    %v725 = vmul.f32 %v705, %v721
    %v726 = vsub.f32 1.0, %v722
    %v727 = vsub.f32 1.0, %v723
    %v728 = vsub.f32 1.0, %v724
    %v729 = vsub.f32 1.0, %v725
    %vm730 = vcmp.ge.f32.partialorder %v638, 0.0
    %vm731 = vcmp.ge.f32.partialorder %v639, 0.0
    %vm732 = vcmp.ge.f32.partialorder %v640, 0.0
    %vm733 = vcmp.ge.f32.partialorder %v641, 0.0
    %v734 = vsub.f32 0.0, %v726
    %v735 = vsub.f32 0.0, %v727
    %v736 = vsub.f32 0.0, %v728
    %v737 = vsub.f32 0.0, %v729
    %v738 = vsel %vm730, %v726, %v734
    %v739 = vsel %vm731, %v727, %v735
    %v740 = vsel %vm732, %v728, %v736
    %v741 = vsel %vm733, %v729, %v737
    %v742 = vadd.f32 %v738, 1.0
    %v743 = vadd.f32 %v739, 1.0
    %v744 = vadd.f32 %v740, 1.0
    %v745 = vadd.f32 %v741, 1.0
    %v746 = vmul.f32 %v634, %v742
    %v747 = vmul.f32 %v635, %v743
    %v748 = vmul.f32 %v636, %v744
    %v749 = vmul.f32 %v637, %v745
    %v750 = vcombine.high %v746, 0.0
    %v752 = vunpack.c.l.s4 1983009808
    %v753 = vunpack.c.0.s8 %v752
    %v754 = vlaneseq
    %v755 = vshrl.u32 %v754, 7
    %v756 = vsub.s32 %v753, %v755
    %v757 = vrot.slane %v746, %v756
    %v759 = vunpack.c.l.s4 1983009808
    %v760 = vunpack.c.0.s8 %v759
    %v761 = vlaneseq
    %v762 = vshrl.u32 %v761, 7
    %v763 = vsub.s32 %v760, %v762
    %v764 = vrot.slane %v750, %v763
    %v765 = vcombine.high %v747, 0.0
    %v767 = vunpack.c.l.s4 1983009808
    %v768 = vunpack.c.0.s8 %v767
    %v769 = vlaneseq
    %v770 = vshrl.u32 %v769, 7
    %v771 = vsub.s32 %v768, %v770
    %v772 = vrot.slane %v747, %v771
    %v774 = vunpack.c.l.s4 1983009808
    %v775 = vunpack.c.0.s8 %v774
    %v776 = vlaneseq
    %v777 = vshrl.u32 %v776, 7
    %v778 = vsub.s32 %v775, %v777
    %v779 = vrot.slane %v765, %v778
    %v780 = vcombine.low %v757, %v772
    %v781 = vcombine.high %v757, %v772
    %v783 = vunpack.c.l.s4 1934713408
    %v784 = vunpack.c.0.s8 %v783
    %v785 = vlaneseq
    %v786 = vshrl.u32 %v785, 7
    %v787 = vsub.s32 %v784, %v786
    %v788 = vrot.slane %v780, %v787
    %v790 = vunpack.c.l.s4 1934713408
    %v791 = vunpack.c.0.s8 %v790
    %v792 = vlaneseq
    %v793 = vshrl.u32 %v792, 7
    %v794 = vsub.s32 %v791, %v793
    %v795 = vrot.slane %v781, %v794
    %v796 = vcombine.low %v764, %v779
    %v797 = vcombine.high %v764, %v779
    %v799 = vunpack.c.l.s4 1934713408
    %v800 = vunpack.c.0.s8 %v799
    %v801 = vlaneseq
    %v802 = vshrl.u32 %v801, 7
    %v803 = vsub.s32 %v800, %v802
    %v804 = vrot.slane %v796, %v803
    %v806 = vunpack.c.l.s4 1934713408
    %v807 = vunpack.c.0.s8 %v806
    %v808 = vlaneseq
    %v809 = vshrl.u32 %v808, 7
    %v810 = vsub.s32 %v807, %v809
    %v811 = vrot.slane %v797, %v810
    %v812 = vcombine.high %v788, 0.0
    %v813 = vcombine.high %v795, 0.0
    %v814 = vcombine.high %v804, 0.0
    %v815 = vcombine.high %v811, 0.0
    %v816 = vcombine.high %v748, 0.0
    %v818 = vunpack.c.l.s4 1983009808
    %v819 = vunpack.c.0.s8 %v818
    %v820 = vlaneseq
    %v821 = vshrl.u32 %v820, 7
    %v822 = vsub.s32 %v819, %v821
    %v823 = vrot.slane %v748, %v822
    %v825 = vunpack.c.l.s4 1983009808
    %v826 = vunpack.c.0.s8 %v825
    %v827 = vlaneseq
    %v828 = vshrl.u32 %v827, 7
    %v829 = vsub.s32 %v826, %v828
    %v830 = vrot.slane %v816, %v829
    %v831 = vcombine.high %v749, 0.0
    %v833 = vunpack.c.l.s4 1983009808
    %v834 = vunpack.c.0.s8 %v833
    %v835 = vlaneseq
    %v836 = vshrl.u32 %v835, 7
    %v837 = vsub.s32 %v834, %v836
    %v838 = vrot.slane %v749, %v837
    %v840 = vunpack.c.l.s4 1983009808
    %v841 = vunpack.c.0.s8 %v840
    %v842 = vlaneseq
    %v843 = vshrl.u32 %v842, 7
    %v844 = vsub.s32 %v841, %v843
    %v845 = vrot.slane %v831, %v844
    %v846 = vcombine.low %v823, %v838
    %v847 = vcombine.high %v823, %v838
    %v849 = vunpack.c.l.s4 1934713408
    %v850 = vunpack.c.0.s8 %v849
    %v851 = vlaneseq
    %v852 = vshrl.u32 %v851, 7
    %v853 = vsub.s32 %v850, %v852
    %v854 = vrot.slane %v846, %v853
    %v856 = vunpack.c.l.s4 1934713408
    %v857 = vunpack.c.0.s8 %v856
    %v858 = vlaneseq
    %v859 = vshrl.u32 %v858, 7
    %v860 = vsub.s32 %v857, %v859
    %v861 = vrot.slane %v847, %v860
    %v862 = vcombine.low %v830, %v845
    %v863 = vcombine.high %v830, %v845
    %v865 = vunpack.c.l.s4 1934713408
    %v866 = vunpack.c.0.s8 %v865
    %v867 = vlaneseq
    %v868 = vshrl.u32 %v867, 7
    %v869 = vsub.s32 %v866, %v868
    %v870 = vrot.slane %v862, %v869
    %v872 = vunpack.c.l.s4 1934713408
    %v873 = vunpack.c.0.s8 %v872
    %v874 = vlaneseq
    %v875 = vshrl.u32 %v874, 7
    %v876 = vsub.s32 %v873, %v875
    %v877 = vrot.slane %v863, %v876
    %v878 = vcombine.high %v854, 0.0
    %v879 = vcombine.high %v861, 0.0
    %v880 = vcombine.high %v870, 0.0
    %v881 = vcombine.high %v877, 0.0
    %v882 = vcombine.low %v788, %v795
    %v884 = vunpack.c.l.s4 1983009808
    %v885 = vunpack.c.0.s8 %v884
    %v886 = vlaneseq
    %v887 = vshrl.u32 %v886, 7
    %v888 = vsub.s32 %v885, %v887
    %v889 = vrot.slane %v882, %v888
    %v890 = vcombine.low %v812, %v813
    %v892 = vunpack.c.l.s4 1983009808
    %v893 = vunpack.c.0.s8 %v892
    %v894 = vlaneseq
    %v895 = vshrl.u32 %v894, 7
    %v896 = vsub.s32 %v893, %v895
    %v897 = vrot.slane %v890, %v896
    %v898 = vcombine.low %v804, %v811
    %v900 = vunpack.c.l.s4 1983009808
    %v901 = vunpack.c.0.s8 %v900
    %v902 = vlaneseq
    %v903 = vshrl.u32 %v902, 7
    %v904 = vsub.s32 %v901, %v903
    %v905 = vrot.slane %v898, %v904
    %v906 = vcombine.low %v814, %v815
    %v908 = vunpack.c.l.s4 1983009808
    %v909 = vunpack.c.0.s8 %v908
    %v910 = vlaneseq
    %v911 = vshrl.u32 %v910, 7
    %v912 = vsub.s32 %v909, %v911
    %v913 = vrot.slane %v906, %v912
    %v914 = vcombine.low %v889, %v897
    %v916 = vunpack.c.l.s4 1934713408
    %v917 = vunpack.c.0.s8 %v916
    %v918 = vlaneseq
    %v919 = vshrl.u32 %v918, 7
    %v920 = vsub.s32 %v917, %v919
    %v921 = vrot.slane %v914, %v920
    %v922 = vcombine.low %v905, %v913
    %v924 = vunpack.c.l.s4 1934713408
    %v925 = vunpack.c.0.s8 %v924
    %v926 = vlaneseq
    %v927 = vshrl.u32 %v926, 7
    %v928 = vsub.s32 %v925, %v927
    %v929 = vrot.slane %v922, %v928
    %v930 = vcombine.low %v921, %v929
    %v931 = vcombine.high %v921, %v929
    %v932 = vcombine.low %v854, %v861
    %v934 = vunpack.c.l.s4 1983009808
    %v935 = vunpack.c.0.s8 %v934
    %v936 = vlaneseq
    %v937 = vshrl.u32 %v936, 7
    %v938 = vsub.s32 %v935, %v937
    %v939 = vrot.slane %v932, %v938
    %v940 = vcombine.low %v878, %v879
    %v942 = vunpack.c.l.s4 1983009808
    %v943 = vunpack.c.0.s8 %v942
    %v944 = vlaneseq
    %v945 = vshrl.u32 %v944, 7
    %v946 = vsub.s32 %v943, %v945
    %v947 = vrot.slane %v940, %v946
    %v948 = vcombine.low %v870, %v877
    %v950 = vunpack.c.l.s4 1983009808
    %v951 = vunpack.c.0.s8 %v950
    %v952 = vlaneseq
    %v953 = vshrl.u32 %v952, 7
    %v954 = vsub.s32 %v951, %v953
    %v955 = vrot.slane %v948, %v954
    %v956 = vcombine.low %v880, %v881
    %v958 = vunpack.c.l.s4 1983009808
    %v959 = vunpack.c.0.s8 %v958
    %v960 = vlaneseq
    %v961 = vshrl.u32 %v960, 7
    %v962 = vsub.s32 %v959, %v961
    %v963 = vrot.slane %v956, %v962
    %v964 = vcombine.low %v939, %v947
    %v966 = vunpack.c.l.s4 1934713408
    %v967 = vunpack.c.0.s8 %v966
    %v968 = vlaneseq
    %v969 = vshrl.u32 %v968, 7
    %v970 = vsub.s32 %v967, %v969
    %v971 = vrot.slane %v964, %v970
    %v972 = vcombine.low %v955, %v963
    %v974 = vunpack.c.l.s4 1934713408
    %v975 = vunpack.c.0.s8 %v974
    %v976 = vlaneseq
    %v977 = vshrl.u32 %v976, 7
    %v978 = vsub.s32 %v975, %v977
    %v979 = vrot.slane %v972, %v978
    %v980 = vcombine.low %v971, %v979
    %v981 = vcombine.high %v971, %v979
    %v982 = vcombine.high %v930, 0.0
    %v984 = vunpack.c.l.s4 1983009808
    %v985 = vunpack.c.0.s8 %v984
    %v986 = vlaneseq
    %v987 = vshrl.u32 %v986, 7
    %v988 = vsub.s32 %v985, %v987
    %v989 = vrot.slane %v930, %v988
    %v991 = vunpack.c.l.s4 1983009808
    %v992 = vunpack.c.0.s8 %v991
    %v993 = vlaneseq
    %v994 = vshrl.u32 %v993, 7
    %v995 = vsub.s32 %v992, %v994
    %v996 = vrot.slane %v982, %v995
    %v997 = vcombine.high %v931, 0.0
    %v999 = vunpack.c.l.s4 1983009808
    %v1000 = vunpack.c.0.s8 %v999
    %v1001 = vlaneseq
    %v1002 = vshrl.u32 %v1001, 7
    %v1003 = vsub.s32 %v1000, %v1002
    %v1004 = vrot.slane %v931, %v1003
    %v1006 = vunpack.c.l.s4 1983009808
    %v1007 = vunpack.c.0.s8 %v1006
    %v1008 = vlaneseq
    %v1009 = vshrl.u32 %v1008, 7
    %v1010 = vsub.s32 %v1007, %v1009
    %v1011 = vrot.slane %v997, %v1010
    %v1012 = vcombine.low %v989, %v1004
    %v1013 = vcombine.high %v989, %v1004
    %v1015 = vunpack.c.l.s4 1934713408
    %v1016 = vunpack.c.0.s8 %v1015
    %v1017 = vlaneseq
    %v1018 = vshrl.u32 %v1017, 7
    %v1019 = vsub.s32 %v1016, %v1018
    %v1020 = vrot.slane %v1012, %v1019
    %v1022 = vunpack.c.l.s4 1934713408
    %v1023 = vunpack.c.0.s8 %v1022
    %v1024 = vlaneseq
    %v1025 = vshrl.u32 %v1024, 7
    %v1026 = vsub.s32 %v1023, %v1025
    %v1027 = vrot.slane %v1013, %v1026
    %v1028 = vcombine.low %v996, %v1011
    %v1029 = vcombine.high %v996, %v1011
    %v1031 = vunpack.c.l.s4 1934713408
    %v1032 = vunpack.c.0.s8 %v1031
    %v1033 = vlaneseq
    %v1034 = vshrl.u32 %v1033, 7
    %v1035 = vsub.s32 %v1032, %v1034
    %v1036 = vrot.slane %v1028, %v1035
    %v1038 = vunpack.c.l.s4 1934713408
    %v1039 = vunpack.c.0.s8 %v1038
    %v1040 = vlaneseq
    %v1041 = vshrl.u32 %v1040, 7
    %v1042 = vsub.s32 %v1039, %v1041
    %v1043 = vrot.slane %v1029, %v1042
    %v1044 = vcombine.high %v1020, 0.0
    %v1045 = vcombine.high %v1027, 0.0
    %v1046 = vcombine.high %v1036, 0.0
    %v1047 = vcombine.high %v1043, 0.0
    %v1048 = vcombine.high %v980, 0.0
    %v1050 = vunpack.c.l.s4 1983009808
    %v1051 = vunpack.c.0.s8 %v1050
    %v1052 = vlaneseq
    %v1053 = vshrl.u32 %v1052, 7
    %v1054 = vsub.s32 %v1051, %v1053
    %v1055 = vrot.slane %v980, %v1054
    %v1057 = vunpack.c.l.s4 1983009808
    %v1058 = vunpack.c.0.s8 %v1057
    %v1059 = vlaneseq
    %v1060 = vshrl.u32 %v1059, 7
    %v1061 = vsub.s32 %v1058, %v1060
    %v1062 = vrot.slane %v1048, %v1061
    %v1063 = vcombine.high %v981, 0.0
    %v1065 = vunpack.c.l.s4 1983009808
    %v1066 = vunpack.c.0.s8 %v1065
    %v1067 = vlaneseq
    %v1068 = vshrl.u32 %v1067, 7
    %v1069 = vsub.s32 %v1066, %v1068
    %v1070 = vrot.slane %v981, %v1069
    %v1072 = vunpack.c.l.s4 1983009808
    %v1073 = vunpack.c.0.s8 %v1072
    %v1074 = vlaneseq
    %v1075 = vshrl.u32 %v1074, 7
    %v1076 = vsub.s32 %v1073, %v1075
    %v1077 = vrot.slane %v1063, %v1076
    %v1078 = vcombine.low %v1055, %v1070
    %v1079 = vcombine.high %v1055, %v1070
    %v1081 = vunpack.c.l.s4 1934713408
    %v1082 = vunpack.c.0.s8 %v1081
    %v1083 = vlaneseq
    %v1084 = vshrl.u32 %v1083, 7
    %v1085 = vsub.s32 %v1082, %v1084
    %v1086 = vrot.slane %v1078, %v1085
    %v1088 = vunpack.c.l.s4 1934713408
    %v1089 = vunpack.c.0.s8 %v1088
    %v1090 = vlaneseq
    %v1091 = vshrl.u32 %v1090, 7
    %v1092 = vsub.s32 %v1089, %v1091
    %v1093 = vrot.slane %v1079, %v1092
    %v1094 = vcombine.low %v1062, %v1077
    %v1095 = vcombine.high %v1062, %v1077
    %v1097 = vunpack.c.l.s4 1934713408
    %v1098 = vunpack.c.0.s8 %v1097
    %v1099 = vlaneseq
    %v1100 = vshrl.u32 %v1099, 7
    %v1101 = vsub.s32 %v1098, %v1100
    %v1102 = vrot.slane %v1094, %v1101
    %v1104 = vunpack.c.l.s4 1934713408
    %v1105 = vunpack.c.0.s8 %v1104
    %v1106 = vlaneseq
    %v1107 = vshrl.u32 %v1106, 7
    %v1108 = vsub.s32 %v1105, %v1107
    %v1109 = vrot.slane %v1095, %v1108
    %v1110 = vcombine.high %v1086, 0.0
    %v1111 = vcombine.high %v1093, 0.0
    %v1112 = vcombine.high %v1102, 0.0
    %v1113 = vcombine.high %v1109, 0.0
    %v1114 = vld [vmem:[%s2] sm:$0xff]
    %v1115 = vld [vmem:[%s2 + $0x8] sm:$0xff]
    %v1116 = vld [vmem:[%s2 + $0x10] sm:$0xff]
    %v1117 = vld [vmem:[%s2 + $0x18] sm:$0xff]
    %v1118 = vld [vmem:[%s2 + $0x20] sm:$0xff]
    %v1119 = vld [vmem:[%s2 + $0x28] sm:$0xff]
    %v1120 = vld [vmem:[%s2 + $0x30] sm:$0xff]
    %v1121 = vld [vmem:[%s2 + $0x38] sm:$0xff]
    %v1122 = vld [vmem:[%s2 + $0x40] sm:$0xff]
    %v1123 = vld [vmem:[%s2 + $0x48] sm:$0xff]
    %v1124 = vld [vmem:[%s2 + $0x50] sm:$0xff]
    %v1125 = vld [vmem:[%s2 + $0x58] sm:$0xff]
    %v1126 = vld [vmem:[%s2 + $0x60] sm:$0xff]
    %v1127 = vld [vmem:[%s2 + $0x68] sm:$0xff]
    %v1128 = vld [vmem:[%s2 + $0x70] sm:$0xff]
    %v1129 = vld [vmem:[%s2 + $0x78] sm:$0xff]
    %v1130 = vld [vmem:[%s2 + $0x80] sm:$0xff]
    %v1131 = vld [vmem:[%s2 + $0x88] sm:$0xff]
    %v1132 = vld [vmem:[%s2 + $0x90] sm:$0xff]
    %v1133 = vld [vmem:[%s2 + $0x98] sm:$0xff]
    %v1134 = vld [vmem:[%s2 + $0xa0] sm:$0xff]
    %v1135 = vld [vmem:[%s2 + $0xa8] sm:$0xff]
    %v1136 = vld [vmem:[%s2 + $0xb0] sm:$0xff]
    %v1137 = vld [vmem:[%s2 + $0xb8] sm:$0xff]
    %v1138 = vld [vmem:[%s2 + $0xc0] sm:$0xff]
    %v1139 = vld [vmem:[%s2 + $0xc8] sm:$0xff]
    %v1140 = vld [vmem:[%s2 + $0xd0] sm:$0xff]
    %v1141 = vld [vmem:[%s2 + $0xd8] sm:$0xff]
    %v1142 = vld [vmem:[%s2 + $0xe0] sm:$0xff]
    %v1143 = vld [vmem:[%s2 + $0xe8] sm:$0xff]
    %v1144 = vld [vmem:[%s2 + $0xf0] sm:$0xff]
    %v1145 = vld [vmem:[%s2 + $0xf8] sm:$0xff]
    %v1146 = vld [vmem:[%s2 + $0x100] sm:$0xff]
    %v1147 = vld [vmem:[%s2 + $0x108] sm:$0xff]
    %v1148 = vld [vmem:[%s2 + $0x110] sm:$0xff]
    %v1149 = vld [vmem:[%s2 + $0x118] sm:$0xff]
    %v1150 = vld [vmem:[%s2 + $0x120] sm:$0xff]
    %v1151 = vld [vmem:[%s2 + $0x128] sm:$0xff]
    %v1152 = vld [vmem:[%s2 + $0x130] sm:$0xff]
    %v1153 = vld [vmem:[%s2 + $0x138] sm:$0xff]
    %v1154 = vld [vmem:[%s2 + $0x140] sm:$0xff]
    %v1155 = vld [vmem:[%s2 + $0x148] sm:$0xff]
    %v1156 = vld [vmem:[%s2 + $0x150] sm:$0xff]
    %v1157 = vld [vmem:[%s2 + $0x158] sm:$0xff]
    %v1158 = vld [vmem:[%s2 + $0x160] sm:$0xff]
    %v1159 = vld [vmem:[%s2 + $0x168] sm:$0xff]
    %v1160 = vld [vmem:[%s2 + $0x170] sm:$0xff]
    %v1161 = vld [vmem:[%s2 + $0x178] sm:$0xff]
    %v1162 = vld [vmem:[%s2 + $0x180] sm:$0xff]
    %v1163 = vld [vmem:[%s2 + $0x188] sm:$0xff]
    %v1164 = vld [vmem:[%s2 + $0x190] sm:$0xff]
    %v1165 = vld [vmem:[%s2 + $0x198] sm:$0xff]
    %v1166 = vld [vmem:[%s2 + $0x1a0] sm:$0xff]
    %v1167 = vld [vmem:[%s2 + $0x1a8] sm:$0xff]
    %v1168 = vld [vmem:[%s2 + $0x1b0] sm:$0xff]
    %v1169 = vld [vmem:[%s2 + $0x1b8] sm:$0xff]
    %v1170 = vld [vmem:[%s2 + $0x1c0] sm:$0xff]
    %v1171 = vld [vmem:[%s2 + $0x1c8] sm:$0xff]
    %v1172 = vld [vmem:[%s2 + $0x1d0] sm:$0xff]
    %v1173 = vld [vmem:[%s2 + $0x1d8] sm:$0xff]
    %v1174 = vld [vmem:[%s2 + $0x1e0] sm:$0xff]
    %v1175 = vld [vmem:[%s2 + $0x1e8] sm:$0xff]
    %v1176 = vld [vmem:[%s2 + $0x1f0] sm:$0xff]
    %v1177 = vld [vmem:[%s2 + $0x1f8] sm:$0xff]
    %v1178 = vld [vmem:[%s2 + $0x200] sm:$0xff]
    %v1179 = vld [vmem:[%s2 + $0x208] sm:$0xff]
    %v1180 = vld [vmem:[%s2 + $0x210] sm:$0xff]
    %v1181 = vld [vmem:[%s2 + $0x218] sm:$0xff]
    %v1182 = vld [vmem:[%s2 + $0x220] sm:$0xff]
    %v1183 = vld [vmem:[%s2 + $0x228] sm:$0xff]
    %v1184 = vld [vmem:[%s2 + $0x230] sm:$0xff]
    %v1185 = vld [vmem:[%s2 + $0x238] sm:$0xff]
    %v1186 = vld [vmem:[%s2 + $0x240] sm:$0xff]
    %v1187 = vld [vmem:[%s2 + $0x248] sm:$0xff]
    %v1188 = vld [vmem:[%s2 + $0x250] sm:$0xff]
    %v1189 = vld [vmem:[%s2 + $0x258] sm:$0xff]
    %v1190 = vld [vmem:[%s2 + $0x260] sm:$0xff]
    %v1191 = vld [vmem:[%s2 + $0x268] sm:$0xff]
    %v1192 = vld [vmem:[%s2 + $0x270] sm:$0xff]
    %v1193 = vld [vmem:[%s2 + $0x278] sm:$0xff]
    %v1194 = vld [vmem:[%s2 + $0x280] sm:$0xff]
    %v1195 = vld [vmem:[%s2 + $0x288] sm:$0xff]
    %v1196 = vld [vmem:[%s2 + $0x290] sm:$0xff]
    %v1197 = vld [vmem:[%s2 + $0x298] sm:$0xff]
    %v1198 = vld [vmem:[%s2 + $0x2a0] sm:$0xff]
    %v1199 = vld [vmem:[%s2 + $0x2a8] sm:$0xff]
    %v1200 = vld [vmem:[%s2 + $0x2b0] sm:$0xff]
    %v1201 = vld [vmem:[%s2 + $0x2b8] sm:$0xff]
    %v1202 = vld [vmem:[%s2 + $0x2c0] sm:$0xff]
    %v1203 = vld [vmem:[%s2 + $0x2c8] sm:$0xff]
    %v1204 = vld [vmem:[%s2 + $0x2d0] sm:$0xff]
    %v1205 = vld [vmem:[%s2 + $0x2d8] sm:$0xff]
    %v1206 = vld [vmem:[%s2 + $0x2e0] sm:$0xff]
    %v1207 = vld [vmem:[%s2 + $0x2e8] sm:$0xff]
    %v1208 = vld [vmem:[%s2 + $0x2f0] sm:$0xff]
    %v1209 = vld [vmem:[%s2 + $0x2f8] sm:$0xff]
    %v1210 = vld [vmem:[%s2 + $0x300] sm:$0xff]
    %v1211 = vld [vmem:[%s2 + $0x308] sm:$0xff]
    %v1212 = vld [vmem:[%s2 + $0x310] sm:$0xff]
    %v1213 = vld [vmem:[%s2 + $0x318] sm:$0xff]
    %v1214 = vld [vmem:[%s2 + $0x320] sm:$0xff]
    %v1215 = vld [vmem:[%s2 + $0x328] sm:$0xff]
    %v1216 = vld [vmem:[%s2 + $0x330] sm:$0xff]
    %v1217 = vld [vmem:[%s2 + $0x338] sm:$0xff]
    %v1218 = vld [vmem:[%s2 + $0x340] sm:$0xff]
    %v1219 = vld [vmem:[%s2 + $0x348] sm:$0xff]
    %v1220 = vld [vmem:[%s2 + $0x350] sm:$0xff]
    %v1221 = vld [vmem:[%s2 + $0x358] sm:$0xff]
    %v1222 = vld [vmem:[%s2 + $0x360] sm:$0xff]
    %v1223 = vld [vmem:[%s2 + $0x368] sm:$0xff]
    %v1224 = vld [vmem:[%s2 + $0x370] sm:$0xff]
    %v1225 = vld [vmem:[%s2 + $0x378] sm:$0xff]
    %v1226 = vld [vmem:[%s2 + $0x380] sm:$0xff]
    %v1227 = vld [vmem:[%s2 + $0x388] sm:$0xff]
    %v1228 = vld [vmem:[%s2 + $0x390] sm:$0xff]
    %v1229 = vld [vmem:[%s2 + $0x398] sm:$0xff]
    %v1230 = vld [vmem:[%s2 + $0x3a0] sm:$0xff]
    %v1231 = vld [vmem:[%s2 + $0x3a8] sm:$0xff]
    %v1232 = vld [vmem:[%s2 + $0x3b0] sm:$0xff]
    %v1233 = vld [vmem:[%s2 + $0x3b8] sm:$0xff]
    %v1234 = vld [vmem:[%s2 + $0x3c0] sm:$0xff]
    %v1235 = vld [vmem:[%s2 + $0x3c8] sm:$0xff]
    %v1236 = vld [vmem:[%s2 + $0x3d0] sm:$0xff]
    %v1237 = vld [vmem:[%s2 + $0x3d8] sm:$0xff]
    %v1238 = vld [vmem:[%s2 + $0x3e0] sm:$0xff]
    %v1239 = vld [vmem:[%s2 + $0x3e8] sm:$0xff]
    %v1240 = vld [vmem:[%s2 + $0x3f0] sm:$0xff]
    %v1241 = vld [vmem:[%s2 + $0x3f8] sm:$0xff]
    %v1242 = vld [vmem:[%s2 + $0x400] sm:$0xff]
    %v1243 = vld [vmem:[%s2 + $0x408] sm:$0xff]
    %v1244 = vld [vmem:[%s2 + $0x410] sm:$0xff]
    %v1245 = vld [vmem:[%s2 + $0x418] sm:$0xff]
    %v1246 = vld [vmem:[%s2 + $0x420] sm:$0xff]
    %v1247 = vld [vmem:[%s2 + $0x428] sm:$0xff]
    %v1248 = vld [vmem:[%s2 + $0x430] sm:$0xff]
    %v1249 = vld [vmem:[%s2 + $0x438] sm:$0xff]
    %v1250 = vld [vmem:[%s2 + $0x440] sm:$0xff]
    %v1251 = vld [vmem:[%s2 + $0x448] sm:$0xff]
    %v1252 = vld [vmem:[%s2 + $0x450] sm:$0xff]
    %v1253 = vld [vmem:[%s2 + $0x458] sm:$0xff]
    %v1254 = vld [vmem:[%s2 + $0x460] sm:$0xff]
    %v1255 = vld [vmem:[%s2 + $0x468] sm:$0xff]
    %v1256 = vld [vmem:[%s2 + $0x470] sm:$0xff]
    %v1257 = vld [vmem:[%s2 + $0x478] sm:$0xff]
    %v1258 = vld [vmem:[%s2 + $0x480] sm:$0xff]
    %v1259 = vld [vmem:[%s2 + $0x488] sm:$0xff]
    %v1260 = vld [vmem:[%s2 + $0x490] sm:$0xff]
    %v1261 = vld [vmem:[%s2 + $0x498] sm:$0xff]
    %v1262 = vld [vmem:[%s2 + $0x4a0] sm:$0xff]
    %v1263 = vld [vmem:[%s2 + $0x4a8] sm:$0xff]
    %v1264 = vld [vmem:[%s2 + $0x4b0] sm:$0xff]
    %v1265 = vld [vmem:[%s2 + $0x4b8] sm:$0xff]
    %v1266 = vld [vmem:[%s2 + $0x4c0] sm:$0xff]
    %v1267 = vld [vmem:[%s2 + $0x4c8] sm:$0xff]
    %v1268 = vld [vmem:[%s2 + $0x4d0] sm:$0xff]
    %v1269 = vld [vmem:[%s2 + $0x4d8] sm:$0xff]
    %v1270 = vld [vmem:[%s2 + $0x4e0] sm:$0xff]
    %v1271 = vld [vmem:[%s2 + $0x4e8] sm:$0xff]
    %v1272 = vld [vmem:[%s2 + $0x4f0] sm:$0xff]
    %v1273 = vld [vmem:[%s2 + $0x4f8] sm:$0xff]
    %v1274 = vld [vmem:[%s2 + $0x500] sm:$0xff]
    %v1275 = vld [vmem:[%s2 + $0x508] sm:$0xff]
    %v1276 = vld [vmem:[%s2 + $0x510] sm:$0xff]
    %v1277 = vld [vmem:[%s2 + $0x518] sm:$0xff]
    %v1278 = vld [vmem:[%s2 + $0x520] sm:$0xff]
    %v1279 = vld [vmem:[%s2 + $0x528] sm:$0xff]
    %v1280 = vld [vmem:[%s2 + $0x530] sm:$0xff]
    %v1281 = vld [vmem:[%s2 + $0x538] sm:$0xff]
    %v1282 = vld [vmem:[%s2 + $0x540] sm:$0xff]
    %v1283 = vld [vmem:[%s2 + $0x548] sm:$0xff]
    %v1284 = vld [vmem:[%s2 + $0x550] sm:$0xff]
    %v1285 = vld [vmem:[%s2 + $0x558] sm:$0xff]
    %v1286 = vld [vmem:[%s2 + $0x560] sm:$0xff]
    %v1287 = vld [vmem:[%s2 + $0x568] sm:$0xff]
    %v1288 = vld [vmem:[%s2 + $0x570] sm:$0xff]
    %v1289 = vld [vmem:[%s2 + $0x578] sm:$0xff]
    %v1290 = vld [vmem:[%s2 + $0x580] sm:$0xff]
    %v1291 = vld [vmem:[%s2 + $0x588] sm:$0xff]
    %v1292 = vld [vmem:[%s2 + $0x590] sm:$0xff]
    %v1293 = vld [vmem:[%s2 + $0x598] sm:$0xff]
    %v1294 = vld [vmem:[%s2 + $0x5a0] sm:$0xff]
    %v1295 = vld [vmem:[%s2 + $0x5a8] sm:$0xff]
    %v1296 = vld [vmem:[%s2 + $0x5b0] sm:$0xff]
    %v1297 = vld [vmem:[%s2 + $0x5b8] sm:$0xff]
    %v1298 = vld [vmem:[%s2 + $0x5c0] sm:$0xff]
    %v1299 = vld [vmem:[%s2 + $0x5c8] sm:$0xff]
    %v1300 = vld [vmem:[%s2 + $0x5d0] sm:$0xff]
    %v1301 = vld [vmem:[%s2 + $0x5d8] sm:$0xff]
    %v1302 = vld [vmem:[%s2 + $0x5e0] sm:$0xff]
    %v1303 = vld [vmem:[%s2 + $0x5e8] sm:$0xff]
    %v1304 = vld [vmem:[%s2 + $0x5f0] sm:$0xff]
    %v1305 = vld [vmem:[%s2 + $0x5f8] sm:$0xff]
    %v1306 = vld [vmem:[%s2 + $0x600] sm:$0xff]
    %v1307 = vld [vmem:[%s2 + $0x608] sm:$0xff]
    %v1308 = vld [vmem:[%s2 + $0x610] sm:$0xff]
    %v1309 = vld [vmem:[%s2 + $0x618] sm:$0xff]
    %v1310 = vld [vmem:[%s2 + $0x620] sm:$0xff]
    %v1311 = vld [vmem:[%s2 + $0x628] sm:$0xff]
    %v1312 = vld [vmem:[%s2 + $0x630] sm:$0xff]
    %v1313 = vld [vmem:[%s2 + $0x638] sm:$0xff]
    %v1314 = vld [vmem:[%s2 + $0x640] sm:$0xff]
    %v1315 = vld [vmem:[%s2 + $0x648] sm:$0xff]
    %v1316 = vld [vmem:[%s2 + $0x650] sm:$0xff]
    %v1317 = vld [vmem:[%s2 + $0x658] sm:$0xff]
    %v1318 = vld [vmem:[%s2 + $0x660] sm:$0xff]
    %v1319 = vld [vmem:[%s2 + $0x668] sm:$0xff]
    %v1320 = vld [vmem:[%s2 + $0x670] sm:$0xff]
    %v1321 = vld [vmem:[%s2 + $0x678] sm:$0xff]
    %v1322 = vld [vmem:[%s2 + $0x680] sm:$0xff]
    %v1323 = vld [vmem:[%s2 + $0x688] sm:$0xff]
    %v1324 = vld [vmem:[%s2 + $0x690] sm:$0xff]
    %v1325 = vld [vmem:[%s2 + $0x698] sm:$0xff]
    %v1326 = vld [vmem:[%s2 + $0x6a0] sm:$0xff]
    %v1327 = vld [vmem:[%s2 + $0x6a8] sm:$0xff]
    %v1328 = vld [vmem:[%s2 + $0x6b0] sm:$0xff]
    %v1329 = vld [vmem:[%s2 + $0x6b8] sm:$0xff]
    %v1330 = vld [vmem:[%s2 + $0x6c0] sm:$0xff]
    %v1331 = vld [vmem:[%s2 + $0x6c8] sm:$0xff]
    %v1332 = vld [vmem:[%s2 + $0x6d0] sm:$0xff]
    %v1333 = vld [vmem:[%s2 + $0x6d8] sm:$0xff]
    %v1334 = vld [vmem:[%s2 + $0x6e0] sm:$0xff]
    %v1335 = vld [vmem:[%s2 + $0x6e8] sm:$0xff]
    %v1336 = vld [vmem:[%s2 + $0x6f0] sm:$0xff]
    %v1337 = vld [vmem:[%s2 + $0x6f8] sm:$0xff]
    %v1338 = vld [vmem:[%s2 + $0x700] sm:$0xff]
    %v1339 = vld [vmem:[%s2 + $0x708] sm:$0xff]
    %v1340 = vld [vmem:[%s2 + $0x710] sm:$0xff]
    %v1341 = vld [vmem:[%s2 + $0x718] sm:$0xff]
    %v1342 = vld [vmem:[%s2 + $0x720] sm:$0xff]
    %v1343 = vld [vmem:[%s2 + $0x728] sm:$0xff]
    %v1344 = vld [vmem:[%s2 + $0x730] sm:$0xff]
    %v1345 = vld [vmem:[%s2 + $0x738] sm:$0xff]
    %v1346 = vld [vmem:[%s2 + $0x740] sm:$0xff]
    %v1347 = vld [vmem:[%s2 + $0x748] sm:$0xff]
    %v1348 = vld [vmem:[%s2 + $0x750] sm:$0xff]
    %v1349 = vld [vmem:[%s2 + $0x758] sm:$0xff]
    %v1350 = vld [vmem:[%s2 + $0x760] sm:$0xff]
    %v1351 = vld [vmem:[%s2 + $0x768] sm:$0xff]
    %v1352 = vld [vmem:[%s2 + $0x770] sm:$0xff]
    %v1353 = vld [vmem:[%s2 + $0x778] sm:$0xff]
    %v1354 = vld [vmem:[%s2 + $0x780] sm:$0xff]
    %v1355 = vld [vmem:[%s2 + $0x788] sm:$0xff]
    %v1356 = vld [vmem:[%s2 + $0x790] sm:$0xff]
    %v1357 = vld [vmem:[%s2 + $0x798] sm:$0xff]
    %v1358 = vld [vmem:[%s2 + $0x7a0] sm:$0xff]
    %v1359 = vld [vmem:[%s2 + $0x7a8] sm:$0xff]
    %v1360 = vld [vmem:[%s2 + $0x7b0] sm:$0xff]
    %v1361 = vld [vmem:[%s2 + $0x7b8] sm:$0xff]
    %v1362 = vld [vmem:[%s2 + $0x7c0] sm:$0xff]
    %v1363 = vld [vmem:[%s2 + $0x7c8] sm:$0xff]
    %v1364 = vld [vmem:[%s2 + $0x7d0] sm:$0xff]
    %v1365 = vld [vmem:[%s2 + $0x7d8] sm:$0xff]
    %v1366 = vld [vmem:[%s2 + $0x7e0] sm:$0xff]
    %v1367 = vld [vmem:[%s2 + $0x7e8] sm:$0xff]
    %v1368 = vld [vmem:[%s2 + $0x7f0] sm:$0xff]
    %v1369 = vld [vmem:[%s2 + $0x7f8] sm:$0xff]
    %v1370 = vld [vmem:[%s1 + $0x60] sm:$0x1]
    %v1371 = vlaneseq
    %v1372 = vshrl.u32 %v1371, 7
    %v1373 = vsub.s32 0, %v1372
    %v1374 = vrot.slane %v1370, %v1373
    %1375 = vmatprep.subr.mxu0 0.0
    %1376 = vmatpush1.msra.mxu0 %v1114
    %1377 = vmatprep.subr.mxu0 0.0
    %1378 = vmatpush1.msra.mxu0 %v1115
    %1379 = vmatprep.subr.mxu0 0.0
    %1380 = vmatpush1.msra.mxu0 %v1116
    %1381 = vmatprep.subr.mxu0 0.0
    %1382 = vmatpush1.msra.mxu0 %v1117
    %1383 = vmatprep.subr.mxu0 0.0
    %1384 = vmatpush1.msra.mxu0 %v1118
    %1385 = vmatprep.subr.mxu0 0.0
    %1386 = vmatpush1.msra.mxu0 %v1119
    %1387 = vmatprep.subr.mxu0 0.0
    %1388 = vmatpush1.msra.mxu0 %v1120
    %1389 = vmatprep.subr.mxu0 0.0
    %1390 = vmatpush1.msra.mxu0 %v1121
    %1391 = vmatprep.subr.mxu0 0.0
    %1392 = vmatpush1.msra.mxu0 %v1122
    %1393 = vmatprep.subr.mxu0 0.0
    %1394 = vmatpush1.msra.mxu0 %v1123
    %1395 = vmatprep.subr.mxu0 0.0
    %1396 = vmatpush1.msra.mxu0 %v1124
    %1397 = vmatprep.subr.mxu0 0.0
    %1398 = vmatpush1.msra.mxu0 %v1125
    %1399 = vmatprep.subr.mxu0 0.0
    %1400 = vmatpush1.msra.mxu0 %v1126
    %1401 = vmatprep.subr.mxu0 0.0
    %1402 = vmatpush1.msra.mxu0 %v1127
    %1403 = vmatprep.subr.mxu0 0.0
    %1404 = vmatpush1.msra.mxu0 %v1128
    %1405 = vmatprep.subr.mxu0 0.0
    %1406 = vmatpush1.msra.mxu0 %v1129
    %1407 = vmatprep.subr.mxu0 0.0
    %1408 = vmatpush1.msra.mxu0 %v1130
    %1409 = vmatprep.subr.mxu0 0.0
    %1410 = vmatpush1.msra.mxu0 %v1131
    %1411 = vmatprep.subr.mxu0 0.0
    %1412 = vmatpush1.msra.mxu0 %v1132
    %1413 = vmatprep.subr.mxu0 0.0
    %1414 = vmatpush1.msra.mxu0 %v1133
    %1415 = vmatprep.subr.mxu0 0.0
    %1416 = vmatpush1.msra.mxu0 %v1134
    %1417 = vmatprep.subr.mxu0 0.0
    %1418 = vmatpush1.msra.mxu0 %v1135
    %1419 = vmatprep.subr.mxu0 0.0
    %1420 = vmatpush1.msra.mxu0 %v1136
    %1421 = vmatprep.subr.mxu0 0.0
    %1422 = vmatpush1.msra.mxu0 %v1137
    %1423 = vmatprep.subr.mxu0 0.0
    %1424 = vmatpush1.msra.mxu0 %v1138
    %1425 = vmatprep.subr.mxu0 0.0
    %1426 = vmatpush1.msra.mxu0 %v1139
    %1427 = vmatprep.subr.mxu0 0.0
    %1428 = vmatpush1.msra.mxu0 %v1140
    %1429 = vmatprep.subr.mxu0 0.0
    %1430 = vmatpush1.msra.mxu0 %v1141
    %1431 = vmatprep.subr.mxu0 0.0
    %1432 = vmatpush1.msra.mxu0 %v1142
    %1433 = vmatprep.subr.mxu0 0.0
    %1434 = vmatpush1.msra.mxu0 %v1143
    %1435 = vmatprep.subr.mxu0 0.0
    %1436 = vmatpush1.msra.mxu0 %v1144
    %1437 = vmatprep.subr.mxu0 0.0
    %1438 = vmatpush1.msra.mxu0 %v1145
    %1439 = vmatprep.mubr.f32.mxu0 %v1044
    %1440 = vmatmul.mubr.f32.gmra.mrb[0].mxu0 %v1020
    %v1441 = vpop.f32.mrb[0].mxu0
    %v1442 = vadd.f32 %v1374, %v1441
    %v1443 = vpop.f32.mrb[0].mxu0
    %1444 = vdwg.mxu0
    %1445 = vmatprep.subr.mxu0 0.0
    %1446 = vmatpush1.msra.mxu0 %v1146
    %1447 = vmatprep.subr.mxu0 0.0
    %1448 = vmatpush1.msra.mxu0 %v1147
    %1449 = vmatprep.subr.mxu0 0.0
    %1450 = vmatpush1.msra.mxu0 %v1148
    %1451 = vmatprep.subr.mxu0 0.0
    %1452 = vmatpush1.msra.mxu0 %v1149
    %1453 = vmatprep.subr.mxu0 0.0
    %1454 = vmatpush1.msra.mxu0 %v1150
    %1455 = vmatprep.subr.mxu0 0.0
    %1456 = vmatpush1.msra.mxu0 %v1151
    %1457 = vmatprep.subr.mxu0 0.0
    %1458 = vmatpush1.msra.mxu0 %v1152
    %1459 = vmatprep.subr.mxu0 0.0
    %1460 = vmatpush1.msra.mxu0 %v1153
    %1461 = vmatprep.subr.mxu0 0.0
    %1462 = vmatpush1.msra.mxu0 %v1154
    %1463 = vmatprep.subr.mxu0 0.0
    %1464 = vmatpush1.msra.mxu0 %v1155
    %1465 = vmatprep.subr.mxu0 0.0
    %1466 = vmatpush1.msra.mxu0 %v1156
    %1467 = vmatprep.subr.mxu0 0.0
    %1468 = vmatpush1.msra.mxu0 %v1157
    %1469 = vmatprep.subr.mxu0 0.0
    %1470 = vmatpush1.msra.mxu0 %v1158
    %1471 = vmatprep.subr.mxu0 0.0
    %1472 = vmatpush1.msra.mxu0 %v1159
    %1473 = vmatprep.subr.mxu0 0.0
    %1474 = vmatpush1.msra.mxu0 %v1160
    %1475 = vmatprep.subr.mxu0 0.0
    %1476 = vmatpush1.msra.mxu0 %v1161
    %1477 = vmatprep.subr.mxu0 0.0
    %1478 = vmatpush1.msra.mxu0 %v1162
    %1479 = vmatprep.subr.mxu0 0.0
    %1480 = vmatpush1.msra.mxu0 %v1163
    %1481 = vmatprep.subr.mxu0 0.0
    %1482 = vmatpush1.msra.mxu0 %v1164
    %1483 = vmatprep.subr.mxu0 0.0
    %1484 = vmatpush1.msra.mxu0 %v1165
    %1485 = vmatprep.subr.mxu0 0.0
    %1486 = vmatpush1.msra.mxu0 %v1166
    %1487 = vmatprep.subr.mxu0 0.0
    %1488 = vmatpush1.msra.mxu0 %v1167
    %1489 = vmatprep.subr.mxu0 0.0
    %1490 = vmatpush1.msra.mxu0 %v1168
    %1491 = vmatprep.subr.mxu0 0.0
    %1492 = vmatpush1.msra.mxu0 %v1169
    %1493 = vmatprep.subr.mxu0 0.0
    %1494 = vmatpush1.msra.mxu0 %v1170
    %1495 = vmatprep.subr.mxu0 0.0
    %1496 = vmatpush1.msra.mxu0 %v1171
    %1497 = vmatprep.subr.mxu0 0.0
    %1498 = vmatpush1.msra.mxu0 %v1172
    %1499 = vmatprep.subr.mxu0 0.0
    %1500 = vmatpush1.msra.mxu0 %v1173
    %1501 = vmatprep.subr.mxu0 0.0
    %1502 = vmatpush1.msra.mxu0 %v1174
    %1503 = vmatprep.subr.mxu0 0.0
    %1504 = vmatpush1.msra.mxu0 %v1175
    %1505 = vmatprep.subr.mxu0 0.0
    %1506 = vmatpush1.msra.mxu0 %v1176
    %1507 = vmatprep.subr.mxu0 0.0
    %1508 = vmatpush1.msra.mxu0 %v1177
    %1509 = vmatprep.mubr.f32.mxu0 %v1045
    %1510 = vmatmul.mubr.f32.gmra.mrb[0].mxu0 %v1027
    %v1511 = vpop.f32.mrb[0].mxu0
    %v1512 = vadd.f32 %v1442, %v1511
    %v1513 = vpop.f32.mrb[0].mxu0
    %1514 = vdwg.mxu0
    %1515 = vmatprep.subr.mxu0 0.0
    %1516 = vmatpush1.msra.mxu0 %v1178
    %1517 = vmatprep.subr.mxu0 0.0
    %1518 = vmatpush1.msra.mxu0 %v1179
    %1519 = vmatprep.subr.mxu0 0.0
    %1520 = vmatpush1.msra.mxu0 %v1180
    %1521 = vmatprep.subr.mxu0 0.0
    %1522 = vmatpush1.msra.mxu0 %v1181
    %1523 = vmatprep.subr.mxu0 0.0
    %1524 = vmatpush1.msra.mxu0 %v1182
    %1525 = vmatprep.subr.mxu0 0.0
    %1526 = vmatpush1.msra.mxu0 %v1183
    %1527 = vmatprep.subr.mxu0 0.0
    %1528 = vmatpush1.msra.mxu0 %v1184
    %1529 = vmatprep.subr.mxu0 0.0
    %1530 = vmatpush1.msra.mxu0 %v1185
    %1531 = vmatprep.subr.mxu0 0.0
    %1532 = vmatpush1.msra.mxu0 %v1186
    %1533 = vmatprep.subr.mxu0 0.0
    %1534 = vmatpush1.msra.mxu0 %v1187
    %1535 = vmatprep.subr.mxu0 0.0
    %1536 = vmatpush1.msra.mxu0 %v1188
    %1537 = vmatprep.subr.mxu0 0.0
    %1538 = vmatpush1.msra.mxu0 %v1189
    %1539 = vmatprep.subr.mxu0 0.0
    %1540 = vmatpush1.msra.mxu0 %v1190
    %1541 = vmatprep.subr.mxu0 0.0
    %1542 = vmatpush1.msra.mxu0 %v1191
    %1543 = vmatprep.subr.mxu0 0.0
    %1544 = vmatpush1.msra.mxu0 %v1192
    %1545 = vmatprep.subr.mxu0 0.0
    %1546 = vmatpush1.msra.mxu0 %v1193
    %1547 = vmatprep.subr.mxu0 0.0
    %1548 = vmatpush1.msra.mxu0 %v1194
    %1549 = vmatprep.subr.mxu0 0.0
    %1550 = vmatpush1.msra.mxu0 %v1195
    %1551 = vmatprep.subr.mxu0 0.0
    %1552 = vmatpush1.msra.mxu0 %v1196
    %1553 = vmatprep.subr.mxu0 0.0
    %1554 = vmatpush1.msra.mxu0 %v1197
    %1555 = vmatprep.subr.mxu0 0.0
    %1556 = vmatpush1.msra.mxu0 %v1198
    %1557 = vmatprep.subr.mxu0 0.0
    %1558 = vmatpush1.msra.mxu0 %v1199
    %1559 = vmatprep.subr.mxu0 0.0
    %1560 = vmatpush1.msra.mxu0 %v1200
    %1561 = vmatprep.subr.mxu0 0.0
    %1562 = vmatpush1.msra.mxu0 %v1201
    %1563 = vmatprep.subr.mxu0 0.0
    %1564 = vmatpush1.msra.mxu0 %v1202
    %1565 = vmatprep.subr.mxu0 0.0
    %1566 = vmatpush1.msra.mxu0 %v1203
    %1567 = vmatprep.subr.mxu0 0.0
    %1568 = vmatpush1.msra.mxu0 %v1204
    %1569 = vmatprep.subr.mxu0 0.0
    %1570 = vmatpush1.msra.mxu0 %v1205
    %1571 = vmatprep.subr.mxu0 0.0
    %1572 = vmatpush1.msra.mxu0 %v1206
    %1573 = vmatprep.subr.mxu0 0.0
    %1574 = vmatpush1.msra.mxu0 %v1207
    %1575 = vmatprep.subr.mxu0 0.0
    %1576 = vmatpush1.msra.mxu0 %v1208
    %1577 = vmatprep.subr.mxu0 0.0
    %1578 = vmatpush1.msra.mxu0 %v1209
    %1579 = vmatprep.mubr.f32.mxu0 %v1046
    %1580 = vmatmul.mubr.f32.gmra.mrb[0].mxu0 %v1036
    %v1581 = vpop.f32.mrb[0].mxu0
    %v1582 = vadd.f32 %v1512, %v1581
    %v1583 = vpop.f32.mrb[0].mxu0
    %1584 = vdwg.mxu0
    %1585 = vmatprep.subr.mxu0 0.0
    %1586 = vmatpush1.msra.mxu0 %v1210
    %1587 = vmatprep.subr.mxu0 0.0
    %1588 = vmatpush1.msra.mxu0 %v1211
    %1589 = vmatprep.subr.mxu0 0.0
    %1590 = vmatpush1.msra.mxu0 %v1212
    %1591 = vmatprep.subr.mxu0 0.0
    %1592 = vmatpush1.msra.mxu0 %v1213
    %1593 = vmatprep.subr.mxu0 0.0
    %1594 = vmatpush1.msra.mxu0 %v1214
    %1595 = vmatprep.subr.mxu0 0.0
    %1596 = vmatpush1.msra.mxu0 %v1215
    %1597 = vmatprep.subr.mxu0 0.0
    %1598 = vmatpush1.msra.mxu0 %v1216
    %1599 = vmatprep.subr.mxu0 0.0
    %1600 = vmatpush1.msra.mxu0 %v1217
    %1601 = vmatprep.subr.mxu0 0.0
    %1602 = vmatpush1.msra.mxu0 %v1218
    %1603 = vmatprep.subr.mxu0 0.0
    %1604 = vmatpush1.msra.mxu0 %v1219
    %1605 = vmatprep.subr.mxu0 0.0
    %1606 = vmatpush1.msra.mxu0 %v1220
    %1607 = vmatprep.subr.mxu0 0.0
    %1608 = vmatpush1.msra.mxu0 %v1221
    %1609 = vmatprep.subr.mxu0 0.0
    %1610 = vmatpush1.msra.mxu0 %v1222
    %1611 = vmatprep.subr.mxu0 0.0
    %1612 = vmatpush1.msra.mxu0 %v1223
    %1613 = vmatprep.subr.mxu0 0.0
    %1614 = vmatpush1.msra.mxu0 %v1224
    %1615 = vmatprep.subr.mxu0 0.0
    %1616 = vmatpush1.msra.mxu0 %v1225
    %1617 = vmatprep.subr.mxu0 0.0
    %1618 = vmatpush1.msra.mxu0 %v1226
    %1619 = vmatprep.subr.mxu0 0.0
    %1620 = vmatpush1.msra.mxu0 %v1227
    %1621 = vmatprep.subr.mxu0 0.0
    %1622 = vmatpush1.msra.mxu0 %v1228
    %1623 = vmatprep.subr.mxu0 0.0
    %1624 = vmatpush1.msra.mxu0 %v1229
    %1625 = vmatprep.subr.mxu0 0.0
    %1626 = vmatpush1.msra.mxu0 %v1230
    %1627 = vmatprep.subr.mxu0 0.0
    %1628 = vmatpush1.msra.mxu0 %v1231
    %1629 = vmatprep.subr.mxu0 0.0
    %1630 = vmatpush1.msra.mxu0 %v1232
    %1631 = vmatprep.subr.mxu0 0.0
    %1632 = vmatpush1.msra.mxu0 %v1233
    %1633 = vmatprep.subr.mxu0 0.0
    %1634 = vmatpush1.msra.mxu0 %v1234
    %1635 = vmatprep.subr.mxu0 0.0
    %1636 = vmatpush1.msra.mxu0 %v1235
    %1637 = vmatprep.subr.mxu0 0.0
    %1638 = vmatpush1.msra.mxu0 %v1236
    %1639 = vmatprep.subr.mxu0 0.0
    %1640 = vmatpush1.msra.mxu0 %v1237
    %1641 = vmatprep.subr.mxu0 0.0
    %1642 = vmatpush1.msra.mxu0 %v1238
    %1643 = vmatprep.subr.mxu0 0.0
    %1644 = vmatpush1.msra.mxu0 %v1239
    %1645 = vmatprep.subr.mxu0 0.0
    %1646 = vmatpush1.msra.mxu0 %v1240
    %1647 = vmatprep.subr.mxu0 0.0
    %1648 = vmatpush1.msra.mxu0 %v1241
    %1649 = vmatprep.mubr.f32.mxu0 %v1047
    %1650 = vmatmul.mubr.f32.gmra.mrb[0].mxu0 %v1043
    %v1651 = vpop.f32.mrb[0].mxu0
    %v1652 = vadd.f32 %v1582, %v1651
    %v1653 = vpop.f32.mrb[0].mxu0
    %1654 = vdwg.mxu0
    %1655 = vmatprep.subr.mxu0 0.0
    %1656 = vmatpush1.msra.mxu0 %v1242
    %1657 = vmatprep.subr.mxu0 0.0
    %1658 = vmatpush1.msra.mxu0 %v1243
    %1659 = vmatprep.subr.mxu0 0.0
    %1660 = vmatpush1.msra.mxu0 %v1244
    %1661 = vmatprep.subr.mxu0 0.0
    %1662 = vmatpush1.msra.mxu0 %v1245
    %1663 = vmatprep.subr.mxu0 0.0
    %1664 = vmatpush1.msra.mxu0 %v1246
    %1665 = vmatprep.subr.mxu0 0.0
    %1666 = vmatpush1.msra.mxu0 %v1247
    %1667 = vmatprep.subr.mxu0 0.0
    %1668 = vmatpush1.msra.mxu0 %v1248
    %1669 = vmatprep.subr.mxu0 0.0
    %1670 = vmatpush1.msra.mxu0 %v1249
    %1671 = vmatprep.subr.mxu0 0.0
    %1672 = vmatpush1.msra.mxu0 %v1250
    %1673 = vmatprep.subr.mxu0 0.0
    %1674 = vmatpush1.msra.mxu0 %v1251
    %1675 = vmatprep.subr.mxu0 0.0
    %1676 = vmatpush1.msra.mxu0 %v1252
    %1677 = vmatprep.subr.mxu0 0.0
    %1678 = vmatpush1.msra.mxu0 %v1253
    %1679 = vmatprep.subr.mxu0 0.0
    %1680 = vmatpush1.msra.mxu0 %v1254
    %1681 = vmatprep.subr.mxu0 0.0
    %1682 = vmatpush1.msra.mxu0 %v1255
    %1683 = vmatprep.subr.mxu0 0.0
    %1684 = vmatpush1.msra.mxu0 %v1256
    %1685 = vmatprep.subr.mxu0 0.0
    %1686 = vmatpush1.msra.mxu0 %v1257
    %1687 = vmatprep.subr.mxu0 0.0
    %1688 = vmatpush1.msra.mxu0 %v1258
    %1689 = vmatprep.subr.mxu0 0.0
    %1690 = vmatpush1.msra.mxu0 %v1259
    %1691 = vmatprep.subr.mxu0 0.0
    %1692 = vmatpush1.msra.mxu0 %v1260
    %1693 = vmatprep.subr.mxu0 0.0
    %1694 = vmatpush1.msra.mxu0 %v1261
    %1695 = vmatprep.subr.mxu0 0.0
    %1696 = vmatpush1.msra.mxu0 %v1262
    %1697 = vmatprep.subr.mxu0 0.0
    %1698 = vmatpush1.msra.mxu0 %v1263
    %1699 = vmatprep.subr.mxu0 0.0
    %1700 = vmatpush1.msra.mxu0 %v1264
    %1701 = vmatprep.subr.mxu0 0.0
    %1702 = vmatpush1.msra.mxu0 %v1265
    %1703 = vmatprep.subr.mxu0 0.0
    %1704 = vmatpush1.msra.mxu0 %v1266
    %1705 = vmatprep.subr.mxu0 0.0
    %1706 = vmatpush1.msra.mxu0 %v1267
    %1707 = vmatprep.subr.mxu0 0.0
    %1708 = vmatpush1.msra.mxu0 %v1268
    %1709 = vmatprep.subr.mxu0 0.0
    %1710 = vmatpush1.msra.mxu0 %v1269
    %1711 = vmatprep.subr.mxu0 0.0
    %1712 = vmatpush1.msra.mxu0 %v1270
    %1713 = vmatprep.subr.mxu0 0.0
    %1714 = vmatpush1.msra.mxu0 %v1271
    %1715 = vmatprep.subr.mxu0 0.0
    %1716 = vmatpush1.msra.mxu0 %v1272
    %1717 = vmatprep.subr.mxu0 0.0
    %1718 = vmatpush1.msra.mxu0 %v1273
    %1719 = vmatprep.mubr.f32.mxu0 %v1110
    %1720 = vmatmul.mubr.f32.gmra.mrb[0].mxu0 %v1086
    %v1721 = vpop.f32.mrb[0].mxu0
    %v1722 = vadd.f32 %v1652, %v1721
    %v1723 = vpop.f32.mrb[0].mxu0
    %1724 = vdwg.mxu0
    %1725 = vmatprep.subr.mxu0 0.0
    %1726 = vmatpush1.msra.mxu0 %v1274
    %1727 = vmatprep.subr.mxu0 0.0
    %1728 = vmatpush1.msra.mxu0 %v1275
    %1729 = vmatprep.subr.mxu0 0.0
    %1730 = vmatpush1.msra.mxu0 %v1276
    %1731 = vmatprep.subr.mxu0 0.0
    %1732 = vmatpush1.msra.mxu0 %v1277
    %1733 = vmatprep.subr.mxu0 0.0
    %1734 = vmatpush1.msra.mxu0 %v1278
    %1735 = vmatprep.subr.mxu0 0.0
    %1736 = vmatpush1.msra.mxu0 %v1279
    %1737 = vmatprep.subr.mxu0 0.0
    %1738 = vmatpush1.msra.mxu0 %v1280
    %1739 = vmatprep.subr.mxu0 0.0
    %1740 = vmatpush1.msra.mxu0 %v1281
    %1741 = vmatprep.subr.mxu0 0.0
    %1742 = vmatpush1.msra.mxu0 %v1282
    %1743 = vmatprep.subr.mxu0 0.0
    %1744 = vmatpush1.msra.mxu0 %v1283
    %1745 = vmatprep.subr.mxu0 0.0
    %1746 = vmatpush1.msra.mxu0 %v1284
    %1747 = vmatprep.subr.mxu0 0.0
    %1748 = vmatpush1.msra.mxu0 %v1285
    %1749 = vmatprep.subr.mxu0 0.0
    %1750 = vmatpush1.msra.mxu0 %v1286
    %1751 = vmatprep.subr.mxu0 0.0
    %1752 = vmatpush1.msra.mxu0 %v1287
    %1753 = vmatprep.subr.mxu0 0.0
    %1754 = vmatpush1.msra.mxu0 %v1288
    %1755 = vmatprep.subr.mxu0 0.0
    %1756 = vmatpush1.msra.mxu0 %v1289
    %1757 = vmatprep.subr.mxu0 0.0
    %1758 = vmatpush1.msra.mxu0 %v1290
    %1759 = vmatprep.subr.mxu0 0.0
    %1760 = vmatpush1.msra.mxu0 %v1291
    %1761 = vmatprep.subr.mxu0 0.0
    %1762 = vmatpush1.msra.mxu0 %v1292
    %1763 = vmatprep.subr.mxu0 0.0
    %1764 = vmatpush1.msra.mxu0 %v1293
    %1765 = vmatprep.subr.mxu0 0.0
    %1766 = vmatpush1.msra.mxu0 %v1294
    %1767 = vmatprep.subr.mxu0 0.0
    %1768 = vmatpush1.msra.mxu0 %v1295
    %1769 = vmatprep.subr.mxu0 0.0
    %1770 = vmatpush1.msra.mxu0 %v1296
    %1771 = vmatprep.subr.mxu0 0.0
    %1772 = vmatpush1.msra.mxu0 %v1297
    %1773 = vmatprep.subr.mxu0 0.0
    %1774 = vmatpush1.msra.mxu0 %v1298
    %1775 = vmatprep.subr.mxu0 0.0
    %1776 = vmatpush1.msra.mxu0 %v1299
    %1777 = vmatprep.subr.mxu0 0.0
    %1778 = vmatpush1.msra.mxu0 %v1300
    %1779 = vmatprep.subr.mxu0 0.0
    %1780 = vmatpush1.msra.mxu0 %v1301
    %1781 = vmatprep.subr.mxu0 0.0
    %1782 = vmatpush1.msra.mxu0 %v1302
    %1783 = vmatprep.subr.mxu0 0.0
    %1784 = vmatpush1.msra.mxu0 %v1303
    %1785 = vmatprep.subr.mxu0 0.0
    %1786 = vmatpush1.msra.mxu0 %v1304
    %1787 = vmatprep.subr.mxu0 0.0
    %1788 = vmatpush1.msra.mxu0 %v1305
    %1789 = vmatprep.mubr.f32.mxu0 %v1111
    %1790 = vmatmul.mubr.f32.gmra.mrb[0].mxu0 %v1093
    %v1791 = vpop.f32.mrb[0].mxu0
    %v1792 = vadd.f32 %v1722, %v1791
    %v1793 = vpop.f32.mrb[0].mxu0
    %1794 = vdwg.mxu0
    %1795 = vmatprep.subr.mxu0 0.0
    %1796 = vmatpush1.msra.mxu0 %v1306
    %1797 = vmatprep.subr.mxu0 0.0
    %1798 = vmatpush1.msra.mxu0 %v1307
    %1799 = vmatprep.subr.mxu0 0.0
    %1800 = vmatpush1.msra.mxu0 %v1308
    %1801 = vmatprep.subr.mxu0 0.0
    %1802 = vmatpush1.msra.mxu0 %v1309
    %1803 = vmatprep.subr.mxu0 0.0
    %1804 = vmatpush1.msra.mxu0 %v1310
    %1805 = vmatprep.subr.mxu0 0.0
    %1806 = vmatpush1.msra.mxu0 %v1311
    %1807 = vmatprep.subr.mxu0 0.0
    %1808 = vmatpush1.msra.mxu0 %v1312
    %1809 = vmatprep.subr.mxu0 0.0
    %1810 = vmatpush1.msra.mxu0 %v1313
    %1811 = vmatprep.subr.mxu0 0.0
    %1812 = vmatpush1.msra.mxu0 %v1314
    %1813 = vmatprep.subr.mxu0 0.0
    %1814 = vmatpush1.msra.mxu0 %v1315
    %1815 = vmatprep.subr.mxu0 0.0
    %1816 = vmatpush1.msra.mxu0 %v1316
    %1817 = vmatprep.subr.mxu0 0.0
    %1818 = vmatpush1.msra.mxu0 %v1317
    %1819 = vmatprep.subr.mxu0 0.0
    %1820 = vmatpush1.msra.mxu0 %v1318
    %1821 = vmatprep.subr.mxu0 0.0
    %1822 = vmatpush1.msra.mxu0 %v1319
    %1823 = vmatprep.subr.mxu0 0.0
    %1824 = vmatpush1.msra.mxu0 %v1320
    %1825 = vmatprep.subr.mxu0 0.0
    %1826 = vmatpush1.msra.mxu0 %v1321
    %1827 = vmatprep.subr.mxu0 0.0
    %1828 = vmatpush1.msra.mxu0 %v1322
    %1829 = vmatprep.subr.mxu0 0.0
    %1830 = vmatpush1.msra.mxu0 %v1323
    %1831 = vmatprep.subr.mxu0 0.0
    %1832 = vmatpush1.msra.mxu0 %v1324
    %1833 = vmatprep.subr.mxu0 0.0
    %1834 = vmatpush1.msra.mxu0 %v1325
    %1835 = vmatprep.subr.mxu0 0.0
    %1836 = vmatpush1.msra.mxu0 %v1326
    %1837 = vmatprep.subr.mxu0 0.0
    %1838 = vmatpush1.msra.mxu0 %v1327
    %1839 = vmatprep.subr.mxu0 0.0
    %1840 = vmatpush1.msra.mxu0 %v1328
    %1841 = vmatprep.subr.mxu0 0.0
    %1842 = vmatpush1.msra.mxu0 %v1329
    %1843 = vmatprep.subr.mxu0 0.0
    %1844 = vmatpush1.msra.mxu0 %v1330
    %1845 = vmatprep.subr.mxu0 0.0
    %1846 = vmatpush1.msra.mxu0 %v1331
    %1847 = vmatprep.subr.mxu0 0.0
    %1848 = vmatpush1.msra.mxu0 %v1332
    %1849 = vmatprep.subr.mxu0 0.0
    %1850 = vmatpush1.msra.mxu0 %v1333
    %1851 = vmatprep.subr.mxu0 0.0
    %1852 = vmatpush1.msra.mxu0 %v1334
    %1853 = vmatprep.subr.mxu0 0.0
    %1854 = vmatpush1.msra.mxu0 %v1335
    %1855 = vmatprep.subr.mxu0 0.0
    %1856 = vmatpush1.msra.mxu0 %v1336
    %1857 = vmatprep.subr.mxu0 0.0
    %1858 = vmatpush1.msra.mxu0 %v1337
    %1859 = vmatprep.mubr.f32.mxu0 %v1112
    %1860 = vmatmul.mubr.f32.gmra.mrb[0].mxu0 %v1102
    %v1861 = vpop.f32.mrb[0].mxu0
    %v1862 = vadd.f32 %v1792, %v1861
    %v1863 = vpop.f32.mrb[0].mxu0
    %1864 = vdwg.mxu0
    %1865 = vmatprep.subr.mxu0 0.0
    %1866 = vmatpush1.msra.mxu0 %v1338
    %1867 = vmatprep.subr.mxu0 0.0
    %1868 = vmatpush1.msra.mxu0 %v1339
    %1869 = vmatprep.subr.mxu0 0.0
    %1870 = vmatpush1.msra.mxu0 %v1340
    %1871 = vmatprep.subr.mxu0 0.0
    %1872 = vmatpush1.msra.mxu0 %v1341
    %1873 = vmatprep.subr.mxu0 0.0
    %1874 = vmatpush1.msra.mxu0 %v1342
    %1875 = vmatprep.subr.mxu0 0.0
    %1876 = vmatpush1.msra.mxu0 %v1343
    %1877 = vmatprep.subr.mxu0 0.0
    %1878 = vmatpush1.msra.mxu0 %v1344
    %1879 = vmatprep.subr.mxu0 0.0
    %1880 = vmatpush1.msra.mxu0 %v1345
    %1881 = vmatprep.subr.mxu0 0.0
    %1882 = vmatpush1.msra.mxu0 %v1346
    %1883 = vmatprep.subr.mxu0 0.0
    %1884 = vmatpush1.msra.mxu0 %v1347
    %1885 = vmatprep.subr.mxu0 0.0
    %1886 = vmatpush1.msra.mxu0 %v1348
    %1887 = vmatprep.subr.mxu0 0.0
    %1888 = vmatpush1.msra.mxu0 %v1349
    %1889 = vmatprep.subr.mxu0 0.0
    %1890 = vmatpush1.msra.mxu0 %v1350
    %1891 = vmatprep.subr.mxu0 0.0
    %1892 = vmatpush1.msra.mxu0 %v1351
    %1893 = vmatprep.subr.mxu0 0.0
    %1894 = vmatpush1.msra.mxu0 %v1352
    %1895 = vmatprep.subr.mxu0 0.0
    %1896 = vmatpush1.msra.mxu0 %v1353
    %1897 = vmatprep.subr.mxu0 0.0
    %1898 = vmatpush1.msra.mxu0 %v1354
    %1899 = vmatprep.subr.mxu0 0.0
    %1900 = vmatpush1.msra.mxu0 %v1355
    %1901 = vmatprep.subr.mxu0 0.0
    %1902 = vmatpush1.msra.mxu0 %v1356
    %1903 = vmatprep.subr.mxu0 0.0
    %1904 = vmatpush1.msra.mxu0 %v1357
    %1905 = vmatprep.subr.mxu0 0.0
    %1906 = vmatpush1.msra.mxu0 %v1358
    %1907 = vmatprep.subr.mxu0 0.0
    %1908 = vmatpush1.msra.mxu0 %v1359
    %1909 = vmatprep.subr.mxu0 0.0
    %1910 = vmatpush1.msra.mxu0 %v1360
    %1911 = vmatprep.subr.mxu0 0.0
    %1912 = vmatpush1.msra.mxu0 %v1361
    %1913 = vmatprep.subr.mxu0 0.0
    %1914 = vmatpush1.msra.mxu0 %v1362
    %1915 = vmatprep.subr.mxu0 0.0
    %1916 = vmatpush1.msra.mxu0 %v1363
    %1917 = vmatprep.subr.mxu0 0.0
    %1918 = vmatpush1.msra.mxu0 %v1364
    %1919 = vmatprep.subr.mxu0 0.0
    %1920 = vmatpush1.msra.mxu0 %v1365
    %1921 = vmatprep.subr.mxu0 0.0
    %1922 = vmatpush1.msra.mxu0 %v1366
    %1923 = vmatprep.subr.mxu0 0.0
    %1924 = vmatpush1.msra.mxu0 %v1367
    %1925 = vmatprep.subr.mxu0 0.0
    %1926 = vmatpush1.msra.mxu0 %v1368
    %1927 = vmatprep.subr.mxu0 0.0
    %1928 = vmatpush1.msra.mxu0 %v1369
    %1929 = vmatprep.mubr.f32.mxu0 %v1113
    %1930 = vmatmul.mubr.f32.gmra.mrb[0].mxu0 %v1109
    %v1931 = vpop.f32.mrb[0].mxu0
    %v1932 = vadd.f32 %v1862, %v1931
    %v1933 = vpop.f32.mrb[0].mxu0
    %1934 = vdwg.mxu0
    %v1935 = vmul.f32 %v1932, 0.5
    %v1936 = vmul.f32 %v1932, 0.70710677
    %v1937 = vand.u32 2147483647, %v1936
    %v1938 = vmul.f32 %v1937, 0.3275911
    %v1939 = vadd.f32 %v1938, 1.0
    %v1940 = vrcp.pop %v1939
    %v1941 = vmul.f32 %v1939, %v1940
    %v1942 = vsub.f32 2.0, %v1941
    %v1943 = vmul.f32 %v1940, %v1942
    %v1944 = vmul.f32 %v1943, 1.0614054
    %v1945 = vadd.f32 %v1944, -1.4531521
    %v1946 = vmul.f32 %v1945, %v1943
    %v1947 = vadd.f32 %v1946, 1.4214138
    %v1948 = vmul.f32 %v1947, %v1943
    %v1949 = vadd.f32 %v1948, -0.28449672
    %v1950 = vmul.f32 %v1949, %v1943
    %v1951 = vadd.f32 %v1950, 0.2548296
    %v1952 = vmul.f32 %v1951, %v1943
    %v1953 = vsub.f32 0.0, %v1937
    %v1954 = vmul.f32 %v1953, %v1937
    %v1955 = vmul.f32 %v1954, 1.442695
    %v1956 = vpow.pop %v1955
    %v1957 = vmul.f32 %v1952, %v1956
    %v1958 = vsub.f32 1.0, %v1957
    %vm1959 = vcmp.ge.f32.partialorder %v1936, 0.0
    %v1960 = vsub.f32 0.0, %v1958
    %v1961 = vsel %vm1959, %v1958, %v1960
    %v1962 = vadd.f32 %v1961, 1.0
    %v1963 = vmul.f32 %v1935, %v1962
    %v1964 = vld [vmem:[%s1 + $0x68] sm:$0xff]
    %v1965 = vld [vmem:[%s1 + $0x70] sm:$0xff]
    %v1966 = vld [vmem:[%s1 + $0x78] sm:$0xff]
    %v1967 = vld [vmem:[%s1 + $0x80] sm:$0xff]
    %v1968 = vld [vmem:[%s1 + $0x88] sm:$0x1]
    %v1969 = vlaneseq
    %v1970 = vshrl.u32 %v1969, 7
    %v1971 = vsub.s32 0, %v1970
    %v1972 = vrot.slane %v1968, %v1971
    %vm1973 = vcmask 261120
    %v1975 = vsel %vm1973, %v1963, 0
    %1977 = vmatprep.subr.mxu0 0.0
    %1978 = vmatpush1.msra.mxu0 %v1964
    %1979 = vmatprep.subr.mxu0 0.0
    %1980 = vmatpush1.msra.mxu0 %v1965
    %1981 = vmatprep.subr.mxu0 0.0
    %1982 = vmatpush1.msra.mxu0 %v1966
    %1983 = vmatprep.subr.mxu0 0.0
    %1984 = vmatpush1.msra.mxu0 %v1967
    %1985 = vmatprep.subr.mxu0 0.0
    %1986 = vmatpush1.msra.mxu0 0.0
    %1987 = vmatprep.subr.mxu0 0.0
    %1988 = vmatpush1.msra.mxu0 0.0
    %1989 = vmatprep.subr.mxu0 0.0
    %1990 = vmatpush1.msra.mxu0 0.0
    %1991 = vmatprep.subr.mxu0 0.0
    %1992 = vmatpush1.msra.mxu0 0.0
    %1993 = vmatprep.subr.mxu0 0.0
    %1994 = vmatpush1.msra.mxu0 0.0
    %1995 = vmatprep.subr.mxu0 0.0
    %1996 = vmatpush1.msra.mxu0 0.0
    %1997 = vmatprep.subr.mxu0 0.0
    %1998 = vmatpush1.msra.mxu0 0.0
    %1999 = vmatprep.subr.mxu0 0.0
    %2000 = vmatpush1.msra.mxu0 0.0
    %2001 = vmatprep.subr.mxu0 0.0
    %2002 = vmatpush1.msra.mxu0 0.0
    %2003 = vmatprep.subr.mxu0 0.0
    %2004 = vmatpush1.msra.mxu0 0.0
    %2005 = vmatprep.subr.mxu0 0.0
    %2006 = vmatpush1.msra.mxu0 0.0
    %2007 = vmatprep.subr.mxu0 0.0
    %2008 = vmatpush1.msra.mxu0 0.0
    %2009 = vmatprep.subr.mxu0 0.0
    %2010 = vmatpush1.msra.mxu0 0.0
    %2011 = vmatprep.subr.mxu0 0.0
    %2012 = vmatpush1.msra.mxu0 0.0
    %2013 = vmatprep.subr.mxu0 0.0
    %2014 = vmatpush1.msra.mxu0 0.0
    %2015 = vmatprep.subr.mxu0 0.0
    %2016 = vmatpush1.msra.mxu0 0.0
    %2017 = vmatprep.subr.mxu0 0.0
    %2018 = vmatpush1.msra.mxu0 0.0
    %2019 = vmatprep.subr.mxu0 0.0
    %2020 = vmatpush1.msra.mxu0 0.0
    %2021 = vmatprep.subr.mxu0 0.0
    %2022 = vmatpush1.msra.mxu0 0.0
    %2023 = vmatprep.subr.mxu0 0.0
    %2024 = vmatpush1.msra.mxu0 0.0
    %2025 = vmatprep.subr.mxu0 0.0
    %2026 = vmatpush1.msra.mxu0 0.0
    %2027 = vmatprep.subr.mxu0 0.0
    %2028 = vmatpush1.msra.mxu0 0.0
    %2029 = vmatprep.subr.mxu0 0.0
    %2030 = vmatpush1.msra.mxu0 0.0
    %2031 = vmatprep.subr.mxu0 0.0
    %2032 = vmatpush1.msra.mxu0 0.0
    %2033 = vmatprep.subr.mxu0 0.0
    %2034 = vmatpush1.msra.mxu0 0.0
    %2035 = vmatprep.subr.mxu0 0.0
    %2036 = vmatpush1.msra.mxu0 0.0
    %2037 = vmatprep.subr.mxu0 0.0
    %2038 = vmatpush1.msra.mxu0 0.0
    %2039 = vmatprep.subr.mxu0 0.0
    %2040 = vmatpush1.msra.mxu0 0.0
    %2041 = vmatprep.mubr.f32.mxu0 0.0
    %2042 = vmatmul.mubr.f32.gmra.mrb[0].mxu0 %v1975
    %v2043 = vpop.f32.mrb[0].mxu0
    %v2044 = vadd.f32 %v1972, %v2043
    %v2045 = vpop.f32.mrb[0].mxu0
    %2046 = vdwg.mxu0
    %2047 = vst [vmem:[#allocation2] sm:$0x3] %v2044
    // Predicated region
    $region14: #{tpu_custom_call.1} parent=1 // pred_check
      _
    $region15: #{tpu_custom_call.1} parent=1 // pred_check_branch
      %2049 = sbr.rel (0) target = $region17
    $region16: #{tpu_custom_call.1} parent=1 // pred_region
      %s2051 = ssub.s32 32, 32
      %2052 = vsyncadd [#allocation3], %s2051
      %s2054 = sshll.u32 [#allocation2], 4
      %s2055 = int_to_ptr.vmem [resolvable:$true] %s2054
      %2057 = dma.vmem_to_hbm [thread:$0]  %s2055, 32, %s3, [#allocation3]
    $region17: #{tpu_custom_call.1} parent=1 // pred_fallthru
      _
    // Predicated region
    $region18: #{tpu_custom_call.1} parent=1 // pred_check
      _
    $region19: #{tpu_custom_call.1} parent=1 // pred_check_branch
      %2059 = sbr.rel (0) target = $region21
    $region20: #{tpu_custom_call.1} parent=1 // pred_region
      %2060 = dma.done [#allocation3], 32
    $region21: #{tpu_custom_call.1} parent=1 // pred_fallthru
      _
    %2061 = vsyncpa [#allocation3], 1

</llo_original>
